<compile_context>
chip_gen: v5e
topology: v5e:2x2
jax: 0.10.0
libtpu: 0.0.40
codegen_flags: <defaults>
</compile_context>

<pallas_src>
import functools

import jax
import jax.numpy as jnp
from jax.experimental import pallas as pl
from jax.experimental.pallas import tpu as pltpu

LANE = 128
SUBLANE = 8


def _round_up(n, m):
    return ((n + m - 1) // m) * m


def _pad2d(x, rows, cols):
    r, c = x.shape
    return jnp.pad(x, ((0, rows - r), (0, cols - c)))


# ---------------------------------------------------------------------------
# Fused kernel: embedding gather + cat tower + concat-MLP, one grid step per
# batch tile; weights are full-block VMEM residents, activations stay in vregs.
# ---------------------------------------------------------------------------
def _fused_mlp_kernel(*refs, n_cat: int, n_mlp_hidden: int, vocab_pad: int):
    idx = 0
    xcat_ref = refs[idx]; idx += 1       # (TB, 1)       int32 category ids
    xcont_ref = refs[idx]; idx += 1      # (TB, C=300)   continuous features
    table_ref = refs[idx]; idx += 1      # (V_pad, E_pad) embedding table

    TB = xcat_ref.shape[0]

    # In-kernel embedding gather as a one-hot MXU matmul:
    #   onehot[t, v] = (v == x_cat[t]);  h = onehot @ table  == table[x_cat]
    ids = xcat_ref[...]                                           # (TB, 1) int32
    vocab_iota = jax.lax.broadcasted_iota(jnp.int32, (TB, vocab_pad), 1)
    onehot = (vocab_iota == ids).astype(jnp.float32)              # (TB, V_pad)
    h = jnp.dot(onehot, table_ref[...], preferred_element_type=jnp.float32)

    # Categorical tower: Linear + ReLU (Dropout == identity at inference).
    for _ in range(n_cat):
        w_ref, b_ref = refs[idx], refs[idx + 1]; idx += 2
        h = jnp.dot(h, w_ref[...], preferred_element_type=jnp.float32)
        h = jnp.maximum(h + b_ref[...], 0.0)

    # First MLP layer without materializing the concat:
    #   concat([h_cat, x_cont]) @ W  ==  h_cat @ W_cat + x_cont @ W_cont
    w0c_ref, w0x_ref, b0_ref = refs[idx], refs[idx + 1], refs[idx + 2]; idx += 3
    acc = jnp.dot(h, w0c_ref[...], preferred_element_type=jnp.float32)
    acc = acc + jnp.dot(xcont_ref[...], w0x_ref[...],
                        preferred_element_type=jnp.float32)
    h = jnp.maximum(acc + b0_ref[...], 0.0)

    # Remaining hidden MLP layers: Linear + ReLU.
    for _ in range(n_mlp_hidden - 1):
        w_ref, b_ref = refs[idx], refs[idx + 1]; idx += 2
        h = jnp.dot(h, w_ref[...], preferred_element_type=jnp.float32)
        h = jnp.maximum(h + b_ref[...], 0.0)

    # Final Linear(d, 1): VPU multiply + cross-lane reduce (no width-1 MXU
    # matmul); write a lane-dense (TB, 128) block (unmasked vst).
    wv_ref, bf_ref = refs[idx], refs[idx + 1]; idx += 2   # (1, Dlast_pad), (1, 128)
    o_ref = refs[idx]                                     # (TB, 128)
    y = jnp.sum(h * wv_ref[...], axis=-1, keepdims=True)  # (TB, 1)
    o_ref[...] = (y + bf_ref[...]).astype(o_ref.dtype)


# ---------------------------------------------------------------------------
# Parameter construction (deterministic, synthetic; PyTorch-shaped logical dims).
# ---------------------------------------------------------------------------
def init_params(key, *, cat_dims, output_dims, emb_output,
                cat_vocab=3774, cont_dim=300):
    params = {}
    keys = jax.random.split(key, 16)
    ki = iter(range(16))

    params["emb_table"] = 0.02 * jax.random.normal(
        keys[next(ki)], (cat_vocab, emb_output), dtype=jnp.float32)

    emb_layers = []
    d_in = emb_output
    for d_out in cat_dims:
        w = 0.05 * jax.random.normal(keys[next(ki)], (d_in, d_out), jnp.float32)
        b = 0.01 * jax.random.normal(keys[next(ki)], (1, d_out), jnp.float32)
        emb_layers.append((w, b))
        d_in = d_out
    params["emb_layers"] = emb_layers

    mlp_layers = []
    d_in = cont_dim + cat_dims[-1]
    for d_out in output_dims:
        w = 0.05 * jax.random.normal(keys[next(ki)], (d_in, d_out), jnp.float32)
        b = 0.01 * jax.random.normal(keys[next(ki)], (1, d_out), jnp.float32)
        mlp_layers.append((w, b))
        d_in = d_out
    w = 0.05 * jax.random.normal(keys[next(ki)], (d_in, 1), jnp.float32)
    b = 0.01 * jax.random.normal(keys[next(ki)], (1, 1), jnp.float32)
    mlp_layers.append((w, b))
    params["mlp_layers"] = mlp_layers
    return params


# ---------------------------------------------------------------------------
# One-time packing: zero-pad / split / transpose every weight so the per-call
# path does no padding work at all.
# ---------------------------------------------------------------------------
def prepare_params(params):
    cat_last = params["emb_layers"][-1][0].shape[1]
    V, E = params["emb_table"].shape
    V_pad = _round_up(V, LANE)      # vocab rows padded so the one-hot K is aligned
    E_pad = _round_up(E, LANE)

    packed = {}
    packed["emb_table"] = _pad2d(params["emb_table"], V_pad, E_pad)

    cat_wb = []
    d_in_pad = E_pad
    for w, b in params["emb_layers"]:
        d_out_pad = _round_up(w.shape[1], LANE)
        cat_wb.append((_pad2d(w, d_in_pad, d_out_pad), _pad2d(b, 1, d_out_pad)))
        d_in_pad = d_out_pad
    packed["cat_wb"] = cat_wb

    mlp_layers = params["mlp_layers"]
    w0, b0 = mlp_layers[0]
    C = w0.shape[0] - cat_last                       # continuous dim (300)
    d0_pad = _round_up(w0.shape[1], LANE)
    packed["w0c"] = _pad2d(w0[:cat_last], d_in_pad, d0_pad)   # cat-feature rows
    packed["w0x"] = _pad2d(w0[cat_last:], C, d0_pad)          # continuous rows (unpadded K)
    packed["b0"] = _pad2d(b0, 1, d0_pad)
    d_in_pad = d0_pad

    hid_wb = []
    for w, b in mlp_layers[1:-1]:
        d_out_pad = _round_up(w.shape[1], LANE)
        hid_wb.append((_pad2d(w, d_in_pad, d_out_pad), _pad2d(b, 1, d_out_pad)))
        d_in_pad = d_out_pad
    packed["hid_wb"] = hid_wb

    w_fin, b_fin = mlp_layers[-1]
    packed["w_fin_row"] = _pad2d(w_fin.T, 1, d_in_pad)                  # (1, Dlast_pad)
    packed["b_fin_bcast"] = jnp.full((1, LANE), b_fin[0, 0], jnp.float32)
    return packed


# ---------------------------------------------------------------------------
# Forward pass (categorical=True): one pallas_call, nothing else.
# ---------------------------------------------------------------------------
def mlp_forward(packed, x_cont, x_cat, *, batch_tile=256):
    B, C = x_cont.shape
    assert packed["w0x"].shape[0] == C

    B8 = _round_up(B, SUBLANE)
    TB = min(_round_up(batch_tile, SUBLANE), B8)
    # v7x has 2 TensorCores: if the whole (large-ish) batch fits one tile,
    # split it in two so both cores get work.
    if pl.cdiv(B, TB) == 1 and B8 > 128:
        TB = _round_up(B8 // 2, SUBLANE)
    grid = (pl.cdiv(B, TB),)

    x_cat2d = x_cat.reshape(B, 1).astype(jnp.int32)

    inputs = [x_cat2d, x_cont]
    in_specs = [
        pl.BlockSpec((TB, 1), lambda i: (i, 0)),
        pl.BlockSpec((TB, C), lambda i: (i, 0)),   # full last dim, no 300->384 pad
    ]

    def add_full(arr):
        inputs.append(arr)
        r, c = arr.shape
        in_specs.append(pl.BlockSpec((r, c), lambda i: (0, 0)))

    add_full(packed["emb_table"])
    for w, b in packed["cat_wb"]:
        add_full(w)
        add_full(b)
    add_full(packed["w0c"])
    add_full(packed["w0x"])
    add_full(packed["b0"])
    for w, b in packed["hid_wb"]:
        add_full(w)
        add_full(b)
    add_full(packed["w_fin_row"])
    add_full(packed["b_fin_bcast"])

    kernel = functools.partial(
        _fused_mlp_kernel,
        n_cat=len(packed["cat_wb"]),
        n_mlp_hidden=len(packed["hid_wb"]) + 1,
        vocab_pad=packed["emb_table"].shape[0],
    )

    out = pl.pallas_call(
        kernel,
        out_shape=jax.ShapeDtypeStruct((B, LANE), jnp.float32),
        grid=grid,
        in_specs=in_specs,
        out_specs=pl.BlockSpec((TB, LANE), lambda i: (i, 0)),
        compiler_params=pltpu.CompilerParams(
            dimension_semantics=("parallel",),
        ),
    )(*inputs)
    return out[:, :1]


# Pure-JAX reference for correctness checking (mirrors the PyTorch module).
def mlp_reference(params, x_cont, x_cat):
    h_cat = jnp.take(params["emb_table"], x_cat, axis=0)
    for w, b in params["emb_layers"]:
        h_cat = jnp.maximum(h_cat @ w + b, 0.0)
    h = jnp.concatenate([h_cat, x_cont], axis=1)
    n = len(params["mlp_layers"])
    for idx, (w, b) in enumerate(params["mlp_layers"]):
        h = h @ w + b
        if idx < n - 1:
            h = jnp.maximum(h, 0.0)
    return h


if __name__ == "__main__":
    # Small, module-consistent config.
    batch = 8
    cont_dim = 300          # fixed by the module (input_dim = 300)
    emb_output = 32
    cat_dims = [16]
    output_dims = [64, 32]
    cat_vocab = 3774        # fixed by the module

    key = jax.random.PRNGKey(0)
    k_params, k_cont, k_cat = jax.random.split(key, 3)

    params = init_params(
        k_params, cat_dims=cat_dims, output_dims=output_dims,
        emb_output=emb_output, cat_vocab=cat_vocab, cont_dim=cont_dim)
    packed = prepare_params(params)            # padding hoisted out of per-call path
    packed = jax.tree_util.tree_map(jax.block_until_ready, packed)

    x_cont = jax.random.normal(k_cont, (batch, cont_dim), dtype=jnp.float32)
    x_cat = jax.random.randint(k_cat, (batch,), 0, cat_vocab, dtype=jnp.int32)

    out = mlp_forward(packed, x_cont, x_cat)
    out = jax.block_until_ready(out)

    ref = jax.block_until_ready(mlp_reference(params, x_cont, x_cat))
    assert out.shape == (batch, 1), out.shape
    assert jnp.allclose(out, ref, atol=1e-3, rtol=1e-3), (out, ref)

    print("KERNEL_OK")
</pallas_src>

<mosaic_0001>
module attributes {stable_mosaic.version = 11 : i64} {
  func.func @_fused_mlp_kernel(%arg0: i32, %arg1: memref<8x1xi32, #tpu.memory_space<vmem>>, %arg2: memref<8x300xf32, #tpu.memory_space<vmem>>, %arg3: memref<3840x128xf32, #tpu.memory_space<vmem>>, %arg4: memref<128x128xf32, #tpu.memory_space<vmem>>, %arg5: memref<1x128xf32, #tpu.memory_space<vmem>>, %arg6: memref<128x128xf32, #tpu.memory_space<vmem>>, %arg7: memref<300x128xf32, #tpu.memory_space<vmem>>, %arg8: memref<1x128xf32, #tpu.memory_space<vmem>>, %arg9: memref<128x128xf32, #tpu.memory_space<vmem>>, %arg10: memref<1x128xf32, #tpu.memory_space<vmem>>, %arg11: memref<1x128xf32, #tpu.memory_space<vmem>>, %arg12: memref<1x128xf32, #tpu.memory_space<vmem>>, %arg13: memref<8x128xf32, #tpu.memory_space<vmem>>) attributes {dimension_semantics = [#tpu.dimension_semantics<parallel>], iteration_bounds = array<i64: 1>, scalar_prefetch = 0 : i64, scratch_operands = 0 : i64, tpu.core_type = #tpu.core_type<tc>, window_params = [{transform_indices = @transform_0, window_bounds = array<i64: 8, 1>}, {transform_indices = @transform_1, window_bounds = array<i64: 8, 300>}, {pipeline_mode = #tpu.pipeline_mode<synchronous>, transform_indices = @transform_2, window_bounds = array<i64: 3840, 128>}, {pipeline_mode = #tpu.pipeline_mode<synchronous>, transform_indices = @transform_3, window_bounds = array<i64: 128, 128>}, {pipeline_mode = #tpu.pipeline_mode<synchronous>, transform_indices = @transform_4, window_bounds = array<i64: 1, 128>}, {pipeline_mode = #tpu.pipeline_mode<synchronous>, transform_indices = @transform_5, window_bounds = array<i64: 128, 128>}, {pipeline_mode = #tpu.pipeline_mode<synchronous>, transform_indices = @transform_6, window_bounds = array<i64: 300, 128>}, {pipeline_mode = #tpu.pipeline_mode<synchronous>, transform_indices = @transform_7, window_bounds = array<i64: 1, 128>}, {pipeline_mode = #tpu.pipeline_mode<synchronous>, transform_indices = @transform_8, window_bounds = array<i64: 128, 128>}, {pipeline_mode = #tpu.pipeline_mode<synchronous>, transform_indices = @transform_9, window_bounds = array<i64: 1, 128>}, {pipeline_mode = #tpu.pipeline_mode<synchronous>, transform_indices = @transform_10, window_bounds = array<i64: 1, 128>}, {pipeline_mode = #tpu.pipeline_mode<synchronous>, transform_indices = @transform_11, window_bounds = array<i64: 1, 128>}, {transform_indices = @transform_12, window_bounds = array<i64: 8, 128>}]} {
    %c0 = arith.constant 0 : index
    %c0_0 = arith.constant 0 : index
    %0 = vector.load %arg1[%c0, %c0_0] : memref<8x1xi32, #tpu.memory_space<vmem>>, vector<8x1xi32>
    %1 = tpu.iota {dimensions = array<i32: 1>} : vector<8x3840xi32>
    %2 = vector.broadcast %0 : vector<8x1xi32> to vector<8x3840xi32>
    %3 = arith.cmpi eq, %1, %2 : vector<8x3840xi32>
    %4 = arith.extui %3 : vector<8x3840xi1> to vector<8x3840xi32>
    %5 = arith.sitofp %4 : vector<8x3840xi32> to vector<8x3840xf32>
    %c0_1 = arith.constant 0 : index
    %c0_2 = arith.constant 0 : index
    %6 = vector.load %arg3[%c0_1, %c0_2] : memref<3840x128xf32, #tpu.memory_space<vmem>>, vector<3840x128xf32>
    %cst = arith.constant dense<0.000000e+00> : vector<8x128xf32>
    %7 = tpu.matmul %5, %6, %cst {dimension_numbers = #tpu.dot_dimension_numbers<[1], [0], [0], [1], [0, 0, 1, 1], [], []>} : vector<8x3840xf32>, vector<3840x128xf32>, vector<8x128xf32> -> vector<8x128xf32>
    %c0_3 = arith.constant 0 : index
    %c0_4 = arith.constant 0 : index
    %8 = vector.load %arg4[%c0_3, %c0_4] : memref<128x128xf32, #tpu.memory_space<vmem>>, vector<128x128xf32>
    %cst_5 = arith.constant dense<0.000000e+00> : vector<8x128xf32>
    %9 = tpu.matmul %7, %8, %cst_5 {dimension_numbers = #tpu.dot_dimension_numbers<[1], [0], [0], [1], [0, 0, 1, 1], [], []>} : vector<8x128xf32>, vector<128x128xf32>, vector<8x128xf32> -> vector<8x128xf32>
    %c0_6 = arith.constant 0 : index
    %c0_7 = arith.constant 0 : index
    %10 = vector.load %arg5[%c0_6, %c0_7] : memref<1x128xf32, #tpu.memory_space<vmem>>, vector<1x128xf32>
    %11 = vector.broadcast %10 : vector<1x128xf32> to vector<8x128xf32>
    %12 = arith.addf %9, %11 : vector<8x128xf32>
    %cst_8 = arith.constant 0.000000e+00 : f32
    %13 = vector.broadcast %cst_8 : f32 to vector<8x128xf32>
    %14 = arith.maximumf %12, %13 : vector<8x128xf32>
    %c0_9 = arith.constant 0 : index
    %c0_10 = arith.constant 0 : index
    %15 = vector.load %arg6[%c0_9, %c0_10] : memref<128x128xf32, #tpu.memory_space<vmem>>, vector<128x128xf32>
    %cst_11 = arith.constant dense<0.000000e+00> : vector<8x128xf32>
    %16 = tpu.matmul %14, %15, %cst_11 {dimension_numbers = #tpu.dot_dimension_numbers<[1], [0], [0], [1], [0, 0, 1, 1], [], []>} : vector<8x128xf32>, vector<128x128xf32>, vector<8x128xf32> -> vector<8x128xf32>
    %c0_12 = arith.constant 0 : index
    %c0_13 = arith.constant 0 : index
    %17 = vector.load %arg2[%c0_12, %c0_13] : memref<8x300xf32, #tpu.memory_space<vmem>>, vector<8x300xf32>
    %c0_14 = arith.constant 0 : index
    %c0_15 = arith.constant 0 : index
    %18 = vector.load %arg7[%c0_14, %c0_15] : memref<300x128xf32, #tpu.memory_space<vmem>>, vector<300x128xf32>
    %cst_16 = arith.constant dense<0.000000e+00> : vector<8x128xf32>
    %19 = tpu.matmul %17, %18, %cst_16 {dimension_numbers = #tpu.dot_dimension_numbers<[1], [0], [0], [1], [0, 0, 1, 1], [], []>} : vector<8x300xf32>, vector<300x128xf32>, vector<8x128xf32> -> vector<8x128xf32>
    %20 = arith.addf %16, %19 : vector<8x128xf32>
    %c0_17 = arith.constant 0 : index
    %c0_18 = arith.constant 0 : index
    %21 = vector.load %arg8[%c0_17, %c0_18] : memref<1x128xf32, #tpu.memory_space<vmem>>, vector<1x128xf32>
    %22 = vector.broadcast %21 : vector<1x128xf32> to vector<8x128xf32>
    %23 = arith.addf %20, %22 : vector<8x128xf32>
    %cst_19 = arith.constant 0.000000e+00 : f32
    %24 = vector.broadcast %cst_19 : f32 to vector<8x128xf32>
    %25 = arith.maximumf %23, %24 : vector<8x128xf32>
    %c0_20 = arith.constant 0 : index
    %c0_21 = arith.constant 0 : index
    %26 = vector.load %arg9[%c0_20, %c0_21] : memref<128x128xf32, #tpu.memory_space<vmem>>, vector<128x128xf32>
    %cst_22 = arith.constant dense<0.000000e+00> : vector<8x128xf32>
    %27 = tpu.matmul %25, %26, %cst_22 {dimension_numbers = #tpu.dot_dimension_numbers<[1], [0], [0], [1], [0, 0, 1, 1], [], []>} : vector<8x128xf32>, vector<128x128xf32>, vector<8x128xf32> -> vector<8x128xf32>
    %c0_23 = arith.constant 0 : index
    %c0_24 = arith.constant 0 : index
    %28 = vector.load %arg10[%c0_23, %c0_24] : memref<1x128xf32, #tpu.memory_space<vmem>>, vector<1x128xf32>
    %29 = vector.broadcast %28 : vector<1x128xf32> to vector<8x128xf32>
    %30 = arith.addf %27, %29 : vector<8x128xf32>
    %cst_25 = arith.constant 0.000000e+00 : f32
    %31 = vector.broadcast %cst_25 : f32 to vector<8x128xf32>
    %32 = arith.maximumf %30, %31 : vector<8x128xf32>
    %c0_26 = arith.constant 0 : index
    %c0_27 = arith.constant 0 : index
    %33 = vector.load %arg11[%c0_26, %c0_27] : memref<1x128xf32, #tpu.memory_space<vmem>>, vector<1x128xf32>
    %34 = vector.broadcast %33 : vector<1x128xf32> to vector<8x128xf32>
    %35 = arith.mulf %32, %34 : vector<8x128xf32>
    %cst_28 = arith.constant dense<0.000000e+00> : vector<8xf32>
    %36 = vector.multi_reduction <add>, %35, %cst_28 [1] : vector<8x128xf32> to vector<8xf32>
    %37 = vector.shape_cast %36 : vector<8xf32> to vector<8x1xf32>
    %c0_29 = arith.constant 0 : index
    %c0_30 = arith.constant 0 : index
    %38 = vector.load %arg12[%c0_29, %c0_30] : memref<1x128xf32, #tpu.memory_space<vmem>>, vector<1x128xf32>
    %39 = vector.broadcast %37 : vector<8x1xf32> to vector<8x128xf32>
    %40 = vector.broadcast %38 : vector<1x128xf32> to vector<8x128xf32>
    %41 = arith.addf %39, %40 : vector<8x128xf32>
    %c0_31 = arith.constant 0 : index
    %c0_32 = arith.constant 0 : index
    %42 = vector.load %arg13[%c0_31, %c0_32] : memref<8x128xf32, #tpu.memory_space<vmem>>, vector<8x128xf32>
    tpu.vector_store %arg13[%c0_31, %c0_32], %41 {strides = array<i32>} : memref<8x128xf32, #tpu.memory_space<vmem>>, vector<8x128xf32>,
    return
  }
  func.func @transform_0(%arg0: i32) -> (i32, i32) {
    %c0_i32 = arith.constant 0 : i32
    %c0_i32_0 = arith.constant 0 : i32
    return %arg0, %c0_i32 : i32, i32
  }
  func.func @transform_1(%arg0: i32) -> (i32, i32) {
    %c0_i32 = arith.constant 0 : i32
    %c0_i32_0 = arith.constant 0 : i32
    return %arg0, %c0_i32 : i32, i32
  }
  func.func @transform_2(%arg0: i32) -> (i32, i32) {
    %c0_i32 = arith.constant 0 : i32
    %c0_i32_0 = arith.constant 0 : i32
    %c0_i32_1 = arith.constant 0 : i32
    return %c0_i32, %c0_i32_0 : i32, i32
  }
  func.func @transform_3(%arg0: i32) -> (i32, i32) {
    %c0_i32 = arith.constant 0 : i32
    %c0_i32_0 = arith.constant 0 : i32
    %c0_i32_1 = arith.constant 0 : i32
    return %c0_i32, %c0_i32_0 : i32, i32
  }
  func.func @transform_4(%arg0: i32) -> (i32, i32) {
    %c0_i32 = arith.constant 0 : i32
    %c0_i32_0 = arith.constant 0 : i32
    %c0_i32_1 = arith.constant 0 : i32
    return %c0_i32, %c0_i32_0 : i32, i32
  }
  func.func @transform_5(%arg0: i32) -> (i32, i32) {
    %c0_i32 = arith.constant 0 : i32
    %c0_i32_0 = arith.constant 0 : i32
    %c0_i32_1 = arith.constant 0 : i32
    return %c0_i32, %c0_i32_0 : i32, i32
  }
  func.func @transform_6(%arg0: i32) -> (i32, i32) {
    %c0_i32 = arith.constant 0 : i32
    %c0_i32_0 = arith.constant 0 : i32
    %c0_i32_1 = arith.constant 0 : i32
    return %c0_i32, %c0_i32_0 : i32, i32
  }
  func.func @transform_7(%arg0: i32) -> (i32, i32) {
    %c0_i32 = arith.constant 0 : i32
    %c0_i32_0 = arith.constant 0 : i32
    %c0_i32_1 = arith.constant 0 : i32
    return %c0_i32, %c0_i32_0 : i32, i32
  }
  func.func @transform_8(%arg0: i32) -> (i32, i32) {
    %c0_i32 = arith.constant 0 : i32
    %c0_i32_0 = arith.constant 0 : i32
    %c0_i32_1 = arith.constant 0 : i32
    return %c0_i32, %c0_i32_0 : i32, i32
  }
  func.func @transform_9(%arg0: i32) -> (i32, i32) {
    %c0_i32 = arith.constant 0 : i32
    %c0_i32_0 = arith.constant 0 : i32
    %c0_i32_1 = arith.constant 0 : i32
    return %c0_i32, %c0_i32_0 : i32, i32
  }
  func.func @transform_10(%arg0: i32) -> (i32, i32) {
    %c0_i32 = arith.constant 0 : i32
    %c0_i32_0 = arith.constant 0 : i32
    %c0_i32_1 = arith.constant 0 : i32
    return %c0_i32, %c0_i32_0 : i32, i32
  }
  func.func @transform_11(%arg0: i32) -> (i32, i32) {
    %c0_i32 = arith.constant 0 : i32
    %c0_i32_0 = arith.constant 0 : i32
    %c0_i32_1 = arith.constant 0 : i32
    return %c0_i32, %c0_i32_0 : i32, i32
  }
  func.func @transform_12(%arg0: i32) -> (i32, i32) {
    %c0_i32 = arith.constant 0 : i32
    %c0_i32_0 = arith.constant 0 : i32
    return %arg0, %c0_i32 : i32, i32
  }
}

</mosaic_0001>

<llo_original>
// kernel: tpu_custom_call.1
$region0: #{tpu_custom_call.1}
  #allocation0 [shape = 'u32[]', space=smem, size = 0x4, offset = 0x4, fixed_abs, tag = 'smem constant byte address 0x4 - core index']
  #allocation1 [shape = 'u32[72,128]{1,0:T(1,128)}', space=vmem, size = 0x9000, scoped, tag = 'internal scratch']
  %s0 = inlined_call_operand.vmem [shape: s32[8,1], index: 0, kind: input, shape index: {}]
  %s1 = inlined_call_operand.hbm [shape: f32[8,300], index: 1, kind: input, shape index: {}]
  %s2 = inlined_call_operand.hbm [shape: f32[3840,128], index: 2, kind: input, shape index: {}]
  %s3 = inlined_call_operand.hbm [shape: f32[128,128], index: 3, kind: input, shape index: {}]
  %s4 = inlined_call_operand.hbm [shape: f32[1,128], index: 4, kind: input, shape index: {}]
  %s5 = inlined_call_operand.hbm [shape: f32[128,128], index: 5, kind: input, shape index: {}]
  %s6 = inlined_call_operand.hbm [shape: f32[300,128], index: 6, kind: input, shape index: {}]
  %s7 = inlined_call_operand.hbm [shape: f32[1,128], index: 7, kind: input, shape index: {}]
  %s8 = inlined_call_operand.hbm [shape: f32[128,128], index: 8, kind: input, shape index: {}]
  %s9 = inlined_call_operand.hbm [shape: f32[1,128], index: 9, kind: input, shape index: {}]
  %s10 = inlined_call_operand.hbm [shape: f32[1,128], index: 10, kind: input, shape index: {}]
  %s11 = inlined_call_operand.hbm [shape: f32[1,128], index: 11, kind: input, shape index: {}]
  %s12 = inlined_call_operand.hbm [shape: f32[8,128], index: 12, kind: output, shape index: {}]
  %s13 = sld [smem:[#allocation0]]
  $region102: #{tpu_custom_call.1} parent=0
    _
  %s15 = ssub.s32 1, %s13
  %s16 = scalar_select 0, %s15, %s13
  $region1: #{tpu_custom_call.1} parent=0
    #allocation2 [shape = 'u8[12288]{0}', space=vmem, size = 0x3000, scoped, tag = 'input window, operand 1, single buffered']
    #allocation3 [shape = 's32[1]{0}', space=sflag, size = 0x4, scoped, tag = 'scoped memory for tpu_custom_call.1']
    #allocation4 [shape = 's32[1]{0}', space=sflag, size = 0x4, scoped, tag = 'scoped memory for tpu_custom_call.1']
    #allocation5 [shape = 'u8[1966080]{0}', space=vmem, size = 0x1e0000, scoped, tag = 'input window, operand 2, single buffered']
    #allocation6 [shape = 's32[1]{0}', space=sflag, size = 0x4, scoped, tag = 'scoped memory for tpu_custom_call.1']
    #allocation7 [shape = 'u8[65536]{0}', space=vmem, size = 0x10000, scoped, tag = 'input window, operand 3, single buffered']
    #allocation8 [shape = 'u8[512]{0}', space=vmem, size = 0x400, scoped, tag = 'input window, operand 4, single buffered']
    #allocation9 [shape = 's32[1]{0}', space=sflag, size = 0x4, scoped, tag = 'scoped memory for tpu_custom_call.1']
    #allocation10 [shape = 'u8[65536]{0}', space=vmem, size = 0x10000, scoped, tag = 'input window, operand 5, single buffered']
    #allocation11 [shape = 'u8[155648]{0}', space=vmem, size = 0x26000, scoped, tag = 'input window, operand 6, single buffered']
    #allocation12 [shape = 's32[1]{0}', space=sflag, size = 0x4, scoped, tag = 'scoped memory for tpu_custom_call.1']
    #allocation13 [shape = 'u8[512]{0}', space=vmem, size = 0x400, scoped, tag = 'input window, operand 7, single buffered']
    #allocation14 [shape = 'u8[65536]{0}', space=vmem, size = 0x10000, scoped, tag = 'input window, operand 8, single buffered']
    #allocation15 [shape = 's32[1]{0}', space=sflag, size = 0x4, scoped, tag = 'scoped memory for tpu_custom_call.1']
    #allocation16 [shape = 'u8[512]{0}', space=vmem, size = 0x400, scoped, tag = 'input window, operand 9, single buffered']
    #allocation17 [shape = 'u8[512]{0}', space=vmem, size = 0x400, scoped, tag = 'input window, operand 10, single buffered']
    #allocation18 [shape = 's32[1]{0}', space=sflag, size = 0x4, scoped, tag = 'scoped memory for tpu_custom_call.1']
    #allocation19 [shape = 'u8[512]{0}', space=vmem, size = 0x400, scoped, tag = 'input window, operand 11, single buffered']
    #allocation20 [shape = 'u8[4096]{0}', space=vmem, size = 0x1000, scoped, tag = 'output window, operand 0, single buffered']
    %17 = vsyncpa [#allocation3], 0
    %18 = vsyncpa [#allocation6], 0
    %19 = vsyncpa [#allocation9], 0
    %20 = vsyncpa [#allocation12], 0
    %21 = vsyncpa [#allocation15], 0
    %22 = vsyncpa [#allocation18], 0
    %23 = vsyncpa [#allocation4], 0
    // Predicated region
    $region2: #{tpu_custom_call.1} parent=1 // pred_check
      _
    $region3: #{tpu_custom_call.1} parent=1 // pred_check_branch
      %25 = sbr.rel (0) target = $region5
    $region4: #{tpu_custom_call.1} parent=1 // pred_region
      _
    $region5: #{tpu_custom_call.1} parent=1 // pred_fallthru
      _
    // Predicated region
    $region6: #{tpu_custom_call.1} parent=1 // pred_check
      _
    $region7: #{tpu_custom_call.1} parent=1 // pred_check_branch
      %27 = sbr.rel (0) target = $region9
    $region8: #{tpu_custom_call.1} parent=1 // pred_region
      %29 = vsyncadd [#allocation3], 0
      %s31 = sshll.u32 %s1, 4
      %s32 = int_to_ptr.hbm [resolvable:$true] %s31
      %s33 = sshll.u32 [#allocation2], 4
      %s34 = int_to_ptr.vmem [resolvable:$true] %s33
      %36 = dma.hbm_to_vmem [thread:$0]  %s32, 384, %s34, [#allocation3]
    $region9: #{tpu_custom_call.1} parent=1 // pred_fallthru
      _
    // Predicated region
    $region10: #{tpu_custom_call.1} parent=1 // pred_check
      _
    $region11: #{tpu_custom_call.1} parent=1 // pred_check_branch
      %38 = sbr.rel (0) target = $region13
    $region12: #{tpu_custom_call.1} parent=1 // pred_region
      %40 = vsyncadd [#allocation6], 0
      %s41 = sshll.u32 %s2, 4
      %s42 = int_to_ptr.hbm [resolvable:$true] %s41
      %s43 = sshll.u32 [#allocation5], 4
      %s44 = int_to_ptr.vmem [resolvable:$true] %s43
      %49 = dma.hbm_to_vmem [thread:$0]  %s42, 61440, %s44, [#allocation6], 128, 128, 8
    $region13: #{tpu_custom_call.1} parent=1 // pred_fallthru
      _
    // Predicated region
    $region14: #{tpu_custom_call.1} parent=1 // pred_check
      _
    $region15: #{tpu_custom_call.1} parent=1 // pred_check_branch
      %51 = sbr.rel (0) target = $region17
    $region16: #{tpu_custom_call.1} parent=1 // pred_region
      %53 = vsyncadd [#allocation6], 0
      %s54 = sshll.u32 %s3, 4
      %s55 = int_to_ptr.hbm [resolvable:$true] %s54
      %s56 = sshll.u32 [#allocation7], 4
      %s57 = int_to_ptr.vmem [resolvable:$true] %s56
      %62 = dma.hbm_to_vmem [thread:$0]  %s55, 2048, %s57, [#allocation6], 128, 128, 8
    $region17: #{tpu_custom_call.1} parent=1 // pred_fallthru
      _
    // Predicated region
    $region18: #{tpu_custom_call.1} parent=1 // pred_check
      _
    $region19: #{tpu_custom_call.1} parent=1 // pred_check_branch
      %64 = sbr.rel (0) target = $region21
    $region20: #{tpu_custom_call.1} parent=1 // pred_region
      %66 = vsyncadd [#allocation9], 0
      %s68 = sshll.u32 %s4, 4
      %s69 = int_to_ptr.hbm [resolvable:$true] %s68
      %s70 = sshll.u32 [#allocation8], 4
      %s71 = int_to_ptr.vmem [resolvable:$true] %s70
      %73 = dma.hbm_to_vmem [thread:$0]  %s69, 16, %s71, [#allocation9]
    $region21: #{tpu_custom_call.1} parent=1 // pred_fallthru
      _
    // Predicated region
    $region22: #{tpu_custom_call.1} parent=1 // pred_check
      _
    $region23: #{tpu_custom_call.1} parent=1 // pred_check_branch
      %75 = sbr.rel (0) target = $region25
    $region24: #{tpu_custom_call.1} parent=1 // pred_region
      %77 = vsyncadd [#allocation9], 0
      %s78 = sshll.u32 %s5, 4
      %s79 = int_to_ptr.hbm [resolvable:$true] %s78
      %s80 = sshll.u32 [#allocation10], 4
      %s81 = int_to_ptr.vmem [resolvable:$true] %s80
      %86 = dma.hbm_to_vmem [thread:$0]  %s79, 2048, %s81, [#allocation9], 128, 128, 8
    $region25: #{tpu_custom_call.1} parent=1 // pred_fallthru
      _
    // Predicated region
    $region26: #{tpu_custom_call.1} parent=1 // pred_check
      _
    $region27: #{tpu_custom_call.1} parent=1 // pred_check_branch
      %88 = sbr.rel (0) target = $region29
    $region28: #{tpu_custom_call.1} parent=1 // pred_region
      %90 = vsyncadd [#allocation12], 0
      %s91 = sshll.u32 %s6, 4
      %s92 = int_to_ptr.hbm [resolvable:$true] %s91
      %s93 = sshll.u32 [#allocation11], 4
      %s94 = int_to_ptr.vmem [resolvable:$true] %s93
      %99 = dma.hbm_to_vmem [thread:$0]  %s92, 4864, %s94, [#allocation12], 128, 128, 8
    $region29: #{tpu_custom_call.1} parent=1 // pred_fallthru
      _
    // Predicated region
    $region30: #{tpu_custom_call.1} parent=1 // pred_check
      _
    $region31: #{tpu_custom_call.1} parent=1 // pred_check_branch
      %101 = sbr.rel (0) target = $region33
    $region32: #{tpu_custom_call.1} parent=1 // pred_region
      %103 = vsyncadd [#allocation12], 0
      %s105 = sshll.u32 %s7, 4
      %s106 = int_to_ptr.hbm [resolvable:$true] %s105
      %s107 = sshll.u32 [#allocation13], 4
      %s108 = int_to_ptr.vmem [resolvable:$true] %s107
      %110 = dma.hbm_to_vmem [thread:$0]  %s106, 16, %s108, [#allocation12]
    $region33: #{tpu_custom_call.1} parent=1 // pred_fallthru
      _
    // Predicated region
    $region34: #{tpu_custom_call.1} parent=1 // pred_check
      _
    $region35: #{tpu_custom_call.1} parent=1 // pred_check_branch
      %112 = sbr.rel (0) target = $region37
    $region36: #{tpu_custom_call.1} parent=1 // pred_region
      %114 = vsyncadd [#allocation15], 0
      %s115 = sshll.u32 %s8, 4
      %s116 = int_to_ptr.hbm [resolvable:$true] %s115
      %s117 = sshll.u32 [#allocation14], 4
      %s118 = int_to_ptr.vmem [resolvable:$true] %s117
      %123 = dma.hbm_to_vmem [thread:$0]  %s116, 2048, %s118, [#allocation15], 128, 128, 8
    $region37: #{tpu_custom_call.1} parent=1 // pred_fallthru
      _
    // Predicated region
    $region38: #{tpu_custom_call.1} parent=1 // pred_check
      _
    $region39: #{tpu_custom_call.1} parent=1 // pred_check_branch
      %125 = sbr.rel (0) target = $region41
    $region40: #{tpu_custom_call.1} parent=1 // pred_region
      %127 = vsyncadd [#allocation15], 0
      %s129 = sshll.u32 %s9, 4
      %s130 = int_to_ptr.hbm [resolvable:$true] %s129
      %s131 = sshll.u32 [#allocation16], 4
      %s132 = int_to_ptr.vmem [resolvable:$true] %s131
      %134 = dma.hbm_to_vmem [thread:$0]  %s130, 16, %s132, [#allocation15]
    $region41: #{tpu_custom_call.1} parent=1 // pred_fallthru
      _
    // Predicated region
    $region42: #{tpu_custom_call.1} parent=1 // pred_check
      _
    $region43: #{tpu_custom_call.1} parent=1 // pred_check_branch
      %136 = sbr.rel (0) target = $region45
    $region44: #{tpu_custom_call.1} parent=1 // pred_region
      %138 = vsyncadd [#allocation18], 0
      %s140 = sshll.u32 %s10, 4
      %s141 = int_to_ptr.hbm [resolvable:$true] %s140
      %s142 = sshll.u32 [#allocation17], 4
      %s143 = int_to_ptr.vmem [resolvable:$true] %s142
      %145 = dma.hbm_to_vmem [thread:$0]  %s141, 16, %s143, [#allocation18]
    $region45: #{tpu_custom_call.1} parent=1 // pred_fallthru
      _
    // Predicated region
    $region46: #{tpu_custom_call.1} parent=1 // pred_check
      _
    $region47: #{tpu_custom_call.1} parent=1 // pred_check_branch
      %147 = sbr.rel (0) target = $region49
    $region48: #{tpu_custom_call.1} parent=1 // pred_region
      %149 = vsyncadd [#allocation18], 0
      %s151 = sshll.u32 %s11, 4
      %s152 = int_to_ptr.hbm [resolvable:$true] %s151
      %s153 = sshll.u32 [#allocation19], 4
      %s154 = int_to_ptr.vmem [resolvable:$true] %s153
      %156 = dma.hbm_to_vmem [thread:$0]  %s152, 16, %s154, [#allocation18]
    $region49: #{tpu_custom_call.1} parent=1 // pred_fallthru
      _
    // Predicated region
    $region50: #{tpu_custom_call.1} parent=1 // pred_check
      _
    $region51: #{tpu_custom_call.1} parent=1 // pred_check_branch
      %158 = sbr.rel (0) target = $region53
    $region52: #{tpu_custom_call.1} parent=1 // pred_region
      %160 = dma.done [#allocation3], 384
    $region53: #{tpu_custom_call.1} parent=1 // pred_fallthru
      _
    // Predicated region
    $region54: #{tpu_custom_call.1} parent=1 // pred_check
      _
    $region55: #{tpu_custom_call.1} parent=1 // pred_check_branch
      %162 = sbr.rel (0) target = $region57
    $region56: #{tpu_custom_call.1} parent=1 // pred_region
      %164 = dma.done [#allocation6], 61440
    $region57: #{tpu_custom_call.1} parent=1 // pred_fallthru
      _
    // Predicated region
    $region58: #{tpu_custom_call.1} parent=1 // pred_check
      _
    $region59: #{tpu_custom_call.1} parent=1 // pred_check_branch
      %166 = sbr.rel (0) target = $region61
    $region60: #{tpu_custom_call.1} parent=1 // pred_region
      %168 = dma.done [#allocation6], 2048
    $region61: #{tpu_custom_call.1} parent=1 // pred_fallthru
      _
    // Predicated region
    $region62: #{tpu_custom_call.1} parent=1 // pred_check
      _
    $region63: #{tpu_custom_call.1} parent=1 // pred_check_branch
      %170 = sbr.rel (0) target = $region65
    $region64: #{tpu_custom_call.1} parent=1 // pred_region
      %172 = dma.done [#allocation9], 16
    $region65: #{tpu_custom_call.1} parent=1 // pred_fallthru
      _
    // Predicated region
    $region66: #{tpu_custom_call.1} parent=1 // pred_check
      _
    $region67: #{tpu_custom_call.1} parent=1 // pred_check_branch
      %174 = sbr.rel (0) target = $region69
    $region68: #{tpu_custom_call.1} parent=1 // pred_region
      %176 = dma.done [#allocation9], 2048
    $region69: #{tpu_custom_call.1} parent=1 // pred_fallthru
      _
    // Predicated region
    $region70: #{tpu_custom_call.1} parent=1 // pred_check
      _
    $region71: #{tpu_custom_call.1} parent=1 // pred_check_branch
      %178 = sbr.rel (0) target = $region73
    $region72: #{tpu_custom_call.1} parent=1 // pred_region
      %180 = dma.done [#allocation12], 4864
    $region73: #{tpu_custom_call.1} parent=1 // pred_fallthru
      _
    // Predicated region
    $region74: #{tpu_custom_call.1} parent=1 // pred_check
      _
    $region75: #{tpu_custom_call.1} parent=1 // pred_check_branch
      %182 = sbr.rel (0) target = $region77
    $region76: #{tpu_custom_call.1} parent=1 // pred_region
      %184 = dma.done [#allocation12], 16
    $region77: #{tpu_custom_call.1} parent=1 // pred_fallthru
      _
    // Predicated region
    $region78: #{tpu_custom_call.1} parent=1 // pred_check
      _
    $region79: #{tpu_custom_call.1} parent=1 // pred_check_branch
      %186 = sbr.rel (0) target = $region81
    $region80: #{tpu_custom_call.1} parent=1 // pred_region
      %188 = dma.done [#allocation15], 2048
    $region81: #{tpu_custom_call.1} parent=1 // pred_fallthru
      _
    // Predicated region
    $region82: #{tpu_custom_call.1} parent=1 // pred_check
      _
    $region83: #{tpu_custom_call.1} parent=1 // pred_check_branch
      %190 = sbr.rel (0) target = $region85
    $region84: #{tpu_custom_call.1} parent=1 // pred_region
      %192 = dma.done [#allocation15], 16
    $region85: #{tpu_custom_call.1} parent=1 // pred_fallthru
      _
    // Predicated region
    $region86: #{tpu_custom_call.1} parent=1 // pred_check
      _
    $region87: #{tpu_custom_call.1} parent=1 // pred_check_branch
      %194 = sbr.rel (0) target = $region89
    $region88: #{tpu_custom_call.1} parent=1 // pred_region
      %196 = dma.done [#allocation18], 16
    $region89: #{tpu_custom_call.1} parent=1 // pred_fallthru
      _
    // Predicated region
    $region90: #{tpu_custom_call.1} parent=1 // pred_check
      _
    $region91: #{tpu_custom_call.1} parent=1 // pred_check_branch
      %198 = sbr.rel (0) target = $region93
    $region92: #{tpu_custom_call.1} parent=1 // pred_region
      %200 = dma.done [#allocation18], 16
    $region93: #{tpu_custom_call.1} parent=1 // pred_fallthru
      _
    %v201 = vld [vmem:[%s0] sm:$0xff]
    %v202 = vlaneseq
    %v203 = vand.u32 %v202, 127
    %v204 = vadd.s32 %v203, 128
    %v205 = vadd.s32 %v203, 256
    %v206 = vadd.s32 %v203, 384
    %v207 = vadd.s32 %v203, 512
    %v208 = vadd.s32 %v203, 640
    %v209 = vadd.s32 %v203, 768
    %v210 = vadd.s32 %v203, 896
    %v211 = vadd.s32 %v203, 1024
    %v212 = vadd.s32 %v203, 1152
    %v213 = vadd.s32 %v203, 1280
    %v214 = vadd.s32 %v203, 1408
    %v215 = vadd.s32 %v203, 1536
    %v216 = vadd.s32 %v203, 1664
    %v217 = vadd.s32 %v203, 1792
    %v218 = vadd.s32 %v203, 1920
    %v219 = vadd.s32 %v203, 2048
    %v220 = vadd.s32 %v203, 2176
    %v221 = vadd.s32 %v203, 2304
    %v222 = vadd.s32 %v203, 2432
    %v223 = vadd.s32 %v203, 2560
    %v224 = vadd.s32 %v203, 2688
    %v225 = vadd.s32 %v203, 2816
    %v226 = vadd.s32 %v203, 2944
    %v227 = vadd.s32 %v203, 3072
    %v228 = vadd.s32 %v203, 3200
    %v229 = vadd.s32 %v203, 3328
    %v230 = vadd.s32 %v203, 3456
    %v231 = vadd.s32 %v203, 3584
    %v232 = vadd.s32 %v203, 3712
    %233 = vset.pattern.permute.xlu0 0
    %234 = vperm.xlu0 %233, %v201
    %v235 = vpop.permute.xlu0 %234
    %vm236 = vcmp.eq.s32.totalorder %v203, %v235
    %vm237 = vcmp.eq.s32.totalorder %v204, %v235
    %vm238 = vcmp.eq.s32.totalorder %v205, %v235
    %vm239 = vcmp.eq.s32.totalorder %v206, %v235
    %vm240 = vcmp.eq.s32.totalorder %v207, %v235
    %vm241 = vcmp.eq.s32.totalorder %v208, %v235
    %vm242 = vcmp.eq.s32.totalorder %v209, %v235
    %vm243 = vcmp.eq.s32.totalorder %v210, %v235
    %vm244 = vcmp.eq.s32.totalorder %v211, %v235
    %vm245 = vcmp.eq.s32.totalorder %v212, %v235
    %vm246 = vcmp.eq.s32.totalorder %v213, %v235
    %vm247 = vcmp.eq.s32.totalorder %v214, %v235
    %vm248 = vcmp.eq.s32.totalorder %v215, %v235
    %vm249 = vcmp.eq.s32.totalorder %v216, %v235
    %vm250 = vcmp.eq.s32.totalorder %v217, %v235
    %vm251 = vcmp.eq.s32.totalorder %v218, %v235
    %vm252 = vcmp.eq.s32.totalorder %v219, %v235
    %vm253 = vcmp.eq.s32.totalorder %v220, %v235
    %vm254 = vcmp.eq.s32.totalorder %v221, %v235
    %vm255 = vcmp.eq.s32.totalorder %v222, %v235
    %vm256 = vcmp.eq.s32.totalorder %v223, %v235
    %vm257 = vcmp.eq.s32.totalorder %v224, %v235
    %vm258 = vcmp.eq.s32.totalorder %v225, %v235
    %vm259 = vcmp.eq.s32.totalorder %v226, %v235
    %vm260 = vcmp.eq.s32.totalorder %v227, %v235
    %vm261 = vcmp.eq.s32.totalorder %v228, %v235
    %vm262 = vcmp.eq.s32.totalorder %v229, %v235
    %vm263 = vcmp.eq.s32.totalorder %v230, %v235
    %vm264 = vcmp.eq.s32.totalorder %v231, %v235
    %vm265 = vcmp.eq.s32.totalorder %v232, %v235
    %v266 = vsel %vm236, 1, 0
    %v267 = vsel %vm237, 1, 0
    %v268 = vsel %vm238, 1, 0
    %v269 = vsel %vm239, 1, 0
    %v270 = vsel %vm240, 1, 0
    %v271 = vsel %vm241, 1, 0
    %v272 = vsel %vm242, 1, 0
    %v273 = vsel %vm243, 1, 0
    %v274 = vsel %vm244, 1, 0
    %v275 = vsel %vm245, 1, 0
    %v276 = vsel %vm246, 1, 0
    %v277 = vsel %vm247, 1, 0
    %v278 = vsel %vm248, 1, 0
    %v279 = vsel %vm249, 1, 0
    %v280 = vsel %vm250, 1, 0
    %v281 = vsel %vm251, 1, 0
    %v282 = vsel %vm252, 1, 0
    %v283 = vsel %vm253, 1, 0
    %v284 = vsel %vm254, 1, 0
    %v285 = vsel %vm255, 1, 0
    %v286 = vsel %vm256, 1, 0
    %v287 = vsel %vm257, 1, 0
    %v288 = vsel %vm258, 1, 0
    %v289 = vsel %vm259, 1, 0
    %v290 = vsel %vm260, 1, 0
    %v291 = vsel %vm261, 1, 0
    %v292 = vsel %vm262, 1, 0
    %v293 = vsel %vm263, 1, 0
    %v294 = vsel %vm264, 1, 0
    %v295 = vsel %vm265, 1, 0
    %v296 = vcvt.s32.f32 %v266
    %v297 = vcvt.s32.f32 %v267
    %v298 = vcvt.s32.f32 %v268
    %v299 = vcvt.s32.f32 %v269
    %v300 = vcvt.s32.f32 %v270
    %v301 = vcvt.s32.f32 %v271
    %v302 = vcvt.s32.f32 %v272
    %v303 = vcvt.s32.f32 %v273
    %v304 = vcvt.s32.f32 %v274
    %v305 = vcvt.s32.f32 %v275
    %v306 = vcvt.s32.f32 %v276
    %v307 = vcvt.s32.f32 %v277
    %v308 = vcvt.s32.f32 %v278
    %v309 = vcvt.s32.f32 %v279
    %v310 = vcvt.s32.f32 %v280
    %v311 = vcvt.s32.f32 %v281
    %v312 = vcvt.s32.f32 %v282
    %v313 = vcvt.s32.f32 %v283
    %v314 = vcvt.s32.f32 %v284
    %v315 = vcvt.s32.f32 %v285
    %v316 = vcvt.s32.f32 %v286
    %v317 = vcvt.s32.f32 %v287
    %v318 = vcvt.s32.f32 %v288
    %v319 = vcvt.s32.f32 %v289
    %v320 = vcvt.s32.f32 %v290
    %v321 = vcvt.s32.f32 %v291
    %v322 = vcvt.s32.f32 %v292
    %v323 = vcvt.s32.f32 %v293
    %v324 = vcvt.s32.f32 %v294
    %v325 = vcvt.s32.f32 %v295
    %v326 = vld [vmem:[#allocation5] sm:$0xff]
    %v327 = vld [vmem:[#allocation5 + $0x8] sm:$0xff]
    %v328 = vld [vmem:[#allocation5 + $0x10] sm:$0xff]
    %v329 = vld [vmem:[#allocation5 + $0x18] sm:$0xff]
    %v330 = vld [vmem:[#allocation5 + $0x20] sm:$0xff]
    %v331 = vld [vmem:[#allocation5 + $0x28] sm:$0xff]
    %v332 = vld [vmem:[#allocation5 + $0x30] sm:$0xff]
    %v333 = vld [vmem:[#allocation5 + $0x38] sm:$0xff]
    %v334 = vld [vmem:[#allocation5 + $0x40] sm:$0xff]
    %v335 = vld [vmem:[#allocation5 + $0x48] sm:$0xff]
    %v336 = vld [vmem:[#allocation5 + $0x50] sm:$0xff]
    %v337 = vld [vmem:[#allocation5 + $0x58] sm:$0xff]
    %v338 = vld [vmem:[#allocation5 + $0x60] sm:$0xff]
    %v339 = vld [vmem:[#allocation5 + $0x68] sm:$0xff]
    %v340 = vld [vmem:[#allocation5 + $0x70] sm:$0xff]
    %v341 = vld [vmem:[#allocation5 + $0x78] sm:$0xff]
    %v342 = vld [vmem:[#allocation5 + $0x80] sm:$0xff]
    %v343 = vld [vmem:[#allocation5 + $0x88] sm:$0xff]
    %v344 = vld [vmem:[#allocation5 + $0x90] sm:$0xff]
    %v345 = vld [vmem:[#allocation5 + $0x98] sm:$0xff]
    %v346 = vld [vmem:[#allocation5 + $0xa0] sm:$0xff]
    %v347 = vld [vmem:[#allocation5 + $0xa8] sm:$0xff]
    %v348 = vld [vmem:[#allocation5 + $0xb0] sm:$0xff]
    %v349 = vld [vmem:[#allocation5 + $0xb8] sm:$0xff]
    %v350 = vld [vmem:[#allocation5 + $0xc0] sm:$0xff]
    %v351 = vld [vmem:[#allocation5 + $0xc8] sm:$0xff]
    %v352 = vld [vmem:[#allocation5 + $0xd0] sm:$0xff]
    %v353 = vld [vmem:[#allocation5 + $0xd8] sm:$0xff]
    %v354 = vld [vmem:[#allocation5 + $0xe0] sm:$0xff]
    %v355 = vld [vmem:[#allocation5 + $0xe8] sm:$0xff]
    %v356 = vld [vmem:[#allocation5 + $0xf0] sm:$0xff]
    %v357 = vld [vmem:[#allocation5 + $0xf8] sm:$0xff]
    %v358 = vld [vmem:[#allocation5 + $0x100] sm:$0xff]
    %v359 = vld [vmem:[#allocation5 + $0x108] sm:$0xff]
    %v360 = vld [vmem:[#allocation5 + $0x110] sm:$0xff]
    %v361 = vld [vmem:[#allocation5 + $0x118] sm:$0xff]
    %v362 = vld [vmem:[#allocation5 + $0x120] sm:$0xff]
    %v363 = vld [vmem:[#allocation5 + $0x128] sm:$0xff]
    %v364 = vld [vmem:[#allocation5 + $0x130] sm:$0xff]
    %v365 = vld [vmem:[#allocation5 + $0x138] sm:$0xff]
    %v366 = vld [vmem:[#allocation5 + $0x140] sm:$0xff]
    %v367 = vld [vmem:[#allocation5 + $0x148] sm:$0xff]
    %v368 = vld [vmem:[#allocation5 + $0x150] sm:$0xff]
    %v369 = vld [vmem:[#allocation5 + $0x158] sm:$0xff]
    %v370 = vld [vmem:[#allocation5 + $0x160] sm:$0xff]
    %v371 = vld [vmem:[#allocation5 + $0x168] sm:$0xff]
    %v372 = vld [vmem:[#allocation5 + $0x170] sm:$0xff]
    %v373 = vld [vmem:[#allocation5 + $0x178] sm:$0xff]
    %v374 = vld [vmem:[#allocation5 + $0x180] sm:$0xff]
    %v375 = vld [vmem:[#allocation5 + $0x188] sm:$0xff]
    %v376 = vld [vmem:[#allocation5 + $0x190] sm:$0xff]
    %v377 = vld [vmem:[#allocation5 + $0x198] sm:$0xff]
    %v378 = vld [vmem:[#allocation5 + $0x1a0] sm:$0xff]
    %v379 = vld [vmem:[#allocation5 + $0x1a8] sm:$0xff]
    %v380 = vld [vmem:[#allocation5 + $0x1b0] sm:$0xff]
    %v381 = vld [vmem:[#allocation5 + $0x1b8] sm:$0xff]
    %v382 = vld [vmem:[#allocation5 + $0x1c0] sm:$0xff]
    %v383 = vld [vmem:[#allocation5 + $0x1c8] sm:$0xff]
    %v384 = vld [vmem:[#allocation5 + $0x1d0] sm:$0xff]
    %v385 = vld [vmem:[#allocation5 + $0x1d8] sm:$0xff]
    %v386 = vld [vmem:[#allocation5 + $0x1e0] sm:$0xff]
    %v387 = vld [vmem:[#allocation5 + $0x1e8] sm:$0xff]
    %v388 = vld [vmem:[#allocation5 + $0x1f0] sm:$0xff]
    %v389 = vld [vmem:[#allocation5 + $0x1f8] sm:$0xff]
    %v390 = vld [vmem:[#allocation5 + $0x200] sm:$0xff]
    %v391 = vld [vmem:[#allocation5 + $0x208] sm:$0xff]
    %v392 = vld [vmem:[#allocation5 + $0x210] sm:$0xff]
    %v393 = vld [vmem:[#allocation5 + $0x218] sm:$0xff]
    %v394 = vld [vmem:[#allocation5 + $0x220] sm:$0xff]
    %v395 = vld [vmem:[#allocation5 + $0x228] sm:$0xff]
    %v396 = vld [vmem:[#allocation5 + $0x230] sm:$0xff]
    %v397 = vld [vmem:[#allocation5 + $0x238] sm:$0xff]
    %v398 = vld [vmem:[#allocation5 + $0x240] sm:$0xff]
    %v399 = vld [vmem:[#allocation5 + $0x248] sm:$0xff]
    %v400 = vld [vmem:[#allocation5 + $0x250] sm:$0xff]
    %v401 = vld [vmem:[#allocation5 + $0x258] sm:$0xff]
    %v402 = vld [vmem:[#allocation5 + $0x260] sm:$0xff]
    %v403 = vld [vmem:[#allocation5 + $0x268] sm:$0xff]
    %v404 = vld [vmem:[#allocation5 + $0x270] sm:$0xff]
    %v405 = vld [vmem:[#allocation5 + $0x278] sm:$0xff]
    %v406 = vld [vmem:[#allocation5 + $0x280] sm:$0xff]
    %v407 = vld [vmem:[#allocation5 + $0x288] sm:$0xff]
    %v408 = vld [vmem:[#allocation5 + $0x290] sm:$0xff]
    %v409 = vld [vmem:[#allocation5 + $0x298] sm:$0xff]
    %v410 = vld [vmem:[#allocation5 + $0x2a0] sm:$0xff]
    %v411 = vld [vmem:[#allocation5 + $0x2a8] sm:$0xff]
    %v412 = vld [vmem:[#allocation5 + $0x2b0] sm:$0xff]
    %v413 = vld [vmem:[#allocation5 + $0x2b8] sm:$0xff]
    %v414 = vld [vmem:[#allocation5 + $0x2c0] sm:$0xff]
    %v415 = vld [vmem:[#allocation5 + $0x2c8] sm:$0xff]
    %v416 = vld [vmem:[#allocation5 + $0x2d0] sm:$0xff]
    %v417 = vld [vmem:[#allocation5 + $0x2d8] sm:$0xff]
    %v418 = vld [vmem:[#allocation5 + $0x2e0] sm:$0xff]
    %v419 = vld [vmem:[#allocation5 + $0x2e8] sm:$0xff]
    %v420 = vld [vmem:[#allocation5 + $0x2f0] sm:$0xff]
    %v421 = vld [vmem:[#allocation5 + $0x2f8] sm:$0xff]
    %v422 = vld [vmem:[#allocation5 + $0x300] sm:$0xff]
    %v423 = vld [vmem:[#allocation5 + $0x308] sm:$0xff]
    %v424 = vld [vmem:[#allocation5 + $0x310] sm:$0xff]
    %v425 = vld [vmem:[#allocation5 + $0x318] sm:$0xff]
    %v426 = vld [vmem:[#allocation5 + $0x320] sm:$0xff]
    %v427 = vld [vmem:[#allocation5 + $0x328] sm:$0xff]
    %v428 = vld [vmem:[#allocation5 + $0x330] sm:$0xff]
    %v429 = vld [vmem:[#allocation5 + $0x338] sm:$0xff]
    %v430 = vld [vmem:[#allocation5 + $0x340] sm:$0xff]
    %v431 = vld [vmem:[#allocation5 + $0x348] sm:$0xff]
    %v432 = vld [vmem:[#allocation5 + $0x350] sm:$0xff]
    %v433 = vld [vmem:[#allocation5 + $0x358] sm:$0xff]
    %v434 = vld [vmem:[#allocation5 + $0x360] sm:$0xff]
    %v435 = vld [vmem:[#allocation5 + $0x368] sm:$0xff]
    %v436 = vld [vmem:[#allocation5 + $0x370] sm:$0xff]
    %v437 = vld [vmem:[#allocation5 + $0x378] sm:$0xff]
    %v438 = vld [vmem:[#allocation5 + $0x380] sm:$0xff]
    %v439 = vld [vmem:[#allocation5 + $0x388] sm:$0xff]
    %v440 = vld [vmem:[#allocation5 + $0x390] sm:$0xff]
    %v441 = vld [vmem:[#allocation5 + $0x398] sm:$0xff]
    %v442 = vld [vmem:[#allocation5 + $0x3a0] sm:$0xff]
    %v443 = vld [vmem:[#allocation5 + $0x3a8] sm:$0xff]
    %v444 = vld [vmem:[#allocation5 + $0x3b0] sm:$0xff]
    %v445 = vld [vmem:[#allocation5 + $0x3b8] sm:$0xff]
    %v446 = vld [vmem:[#allocation5 + $0x3c0] sm:$0xff]
    %v447 = vld [vmem:[#allocation5 + $0x3c8] sm:$0xff]
    %v448 = vld [vmem:[#allocation5 + $0x3d0] sm:$0xff]
    %v449 = vld [vmem:[#allocation5 + $0x3d8] sm:$0xff]
    %v450 = vld [vmem:[#allocation5 + $0x3e0] sm:$0xff]
    %v451 = vld [vmem:[#allocation5 + $0x3e8] sm:$0xff]
    %v452 = vld [vmem:[#allocation5 + $0x3f0] sm:$0xff]
    %v453 = vld [vmem:[#allocation5 + $0x3f8] sm:$0xff]
    %v454 = vld [vmem:[#allocation5 + $0x400] sm:$0xff]
    %v455 = vld [vmem:[#allocation5 + $0x408] sm:$0xff]
    %v456 = vld [vmem:[#allocation5 + $0x410] sm:$0xff]
    %v457 = vld [vmem:[#allocation5 + $0x418] sm:$0xff]
    %v458 = vld [vmem:[#allocation5 + $0x420] sm:$0xff]
    %v459 = vld [vmem:[#allocation5 + $0x428] sm:$0xff]
    %v460 = vld [vmem:[#allocation5 + $0x430] sm:$0xff]
    %v461 = vld [vmem:[#allocation5 + $0x438] sm:$0xff]
    %v462 = vld [vmem:[#allocation5 + $0x440] sm:$0xff]
    %v463 = vld [vmem:[#allocation5 + $0x448] sm:$0xff]
    %v464 = vld [vmem:[#allocation5 + $0x450] sm:$0xff]
    %v465 = vld [vmem:[#allocation5 + $0x458] sm:$0xff]
    %v466 = vld [vmem:[#allocation5 + $0x460] sm:$0xff]
    %v467 = vld [vmem:[#allocation5 + $0x468] sm:$0xff]
    %v468 = vld [vmem:[#allocation5 + $0x470] sm:$0xff]
    %v469 = vld [vmem:[#allocation5 + $0x478] sm:$0xff]
    %v470 = vld [vmem:[#allocation5 + $0x480] sm:$0xff]
    %v471 = vld [vmem:[#allocation5 + $0x488] sm:$0xff]
    %v472 = vld [vmem:[#allocation5 + $0x490] sm:$0xff]
    %v473 = vld [vmem:[#allocation5 + $0x498] sm:$0xff]
    %v474 = vld [vmem:[#allocation5 + $0x4a0] sm:$0xff]
    %v475 = vld [vmem:[#allocation5 + $0x4a8] sm:$0xff]
    %v476 = vld [vmem:[#allocation5 + $0x4b0] sm:$0xff]
    %v477 = vld [vmem:[#allocation5 + $0x4b8] sm:$0xff]
    %v478 = vld [vmem:[#allocation5 + $0x4c0] sm:$0xff]
    %v479 = vld [vmem:[#allocation5 + $0x4c8] sm:$0xff]
    %v480 = vld [vmem:[#allocation5 + $0x4d0] sm:$0xff]
    %v481 = vld [vmem:[#allocation5 + $0x4d8] sm:$0xff]
    %v482 = vld [vmem:[#allocation5 + $0x4e0] sm:$0xff]
    %v483 = vld [vmem:[#allocation5 + $0x4e8] sm:$0xff]
    %v484 = vld [vmem:[#allocation5 + $0x4f0] sm:$0xff]
    %v485 = vld [vmem:[#allocation5 + $0x4f8] sm:$0xff]
    %v486 = vld [vmem:[#allocation5 + $0x500] sm:$0xff]
    %v487 = vld [vmem:[#allocation5 + $0x508] sm:$0xff]
    %v488 = vld [vmem:[#allocation5 + $0x510] sm:$0xff]
    %v489 = vld [vmem:[#allocation5 + $0x518] sm:$0xff]
    %v490 = vld [vmem:[#allocation5 + $0x520] sm:$0xff]
    %v491 = vld [vmem:[#allocation5 + $0x528] sm:$0xff]
    %v492 = vld [vmem:[#allocation5 + $0x530] sm:$0xff]
    %v493 = vld [vmem:[#allocation5 + $0x538] sm:$0xff]
    %v494 = vld [vmem:[#allocation5 + $0x540] sm:$0xff]
    %v495 = vld [vmem:[#allocation5 + $0x548] sm:$0xff]
    %v496 = vld [vmem:[#allocation5 + $0x550] sm:$0xff]
    %v497 = vld [vmem:[#allocation5 + $0x558] sm:$0xff]
    %v498 = vld [vmem:[#allocation5 + $0x560] sm:$0xff]
    %v499 = vld [vmem:[#allocation5 + $0x568] sm:$0xff]
    %v500 = vld [vmem:[#allocation5 + $0x570] sm:$0xff]
    %v501 = vld [vmem:[#allocation5 + $0x578] sm:$0xff]
    %v502 = vld [vmem:[#allocation5 + $0x580] sm:$0xff]
    %v503 = vld [vmem:[#allocation5 + $0x588] sm:$0xff]
    %v504 = vld [vmem:[#allocation5 + $0x590] sm:$0xff]
    %v505 = vld [vmem:[#allocation5 + $0x598] sm:$0xff]
    %v506 = vld [vmem:[#allocation5 + $0x5a0] sm:$0xff]
    %v507 = vld [vmem:[#allocation5 + $0x5a8] sm:$0xff]
    %v508 = vld [vmem:[#allocation5 + $0x5b0] sm:$0xff]
    %v509 = vld [vmem:[#allocation5 + $0x5b8] sm:$0xff]
    %v510 = vld [vmem:[#allocation5 + $0x5c0] sm:$0xff]
    %v511 = vld [vmem:[#allocation5 + $0x5c8] sm:$0xff]
    %v512 = vld [vmem:[#allocation5 + $0x5d0] sm:$0xff]
    %v513 = vld [vmem:[#allocation5 + $0x5d8] sm:$0xff]
    %v514 = vld [vmem:[#allocation5 + $0x5e0] sm:$0xff]
    %v515 = vld [vmem:[#allocation5 + $0x5e8] sm:$0xff]
    %v516 = vld [vmem:[#allocation5 + $0x5f0] sm:$0xff]
    %v517 = vld [vmem:[#allocation5 + $0x5f8] sm:$0xff]
    %v518 = vld [vmem:[#allocation5 + $0x600] sm:$0xff]
    %v519 = vld [vmem:[#allocation5 + $0x608] sm:$0xff]
    %v520 = vld [vmem:[#allocation5 + $0x610] sm:$0xff]
    %v521 = vld [vmem:[#allocation5 + $0x618] sm:$0xff]
    %v522 = vld [vmem:[#allocation5 + $0x620] sm:$0xff]
    %v523 = vld [vmem:[#allocation5 + $0x628] sm:$0xff]
    %v524 = vld [vmem:[#allocation5 + $0x630] sm:$0xff]
    %v525 = vld [vmem:[#allocation5 + $0x638] sm:$0xff]
    %v526 = vld [vmem:[#allocation5 + $0x640] sm:$0xff]
    %v527 = vld [vmem:[#allocation5 + $0x648] sm:$0xff]
    %v528 = vld [vmem:[#allocation5 + $0x650] sm:$0xff]
    %v529 = vld [vmem:[#allocation5 + $0x658] sm:$0xff]
    %v530 = vld [vmem:[#allocation5 + $0x660] sm:$0xff]
    %v531 = vld [vmem:[#allocation5 + $0x668] sm:$0xff]
    %v532 = vld [vmem:[#allocation5 + $0x670] sm:$0xff]
    %v533 = vld [vmem:[#allocation5 + $0x678] sm:$0xff]
    %v534 = vld [vmem:[#allocation5 + $0x680] sm:$0xff]
    %v535 = vld [vmem:[#allocation5 + $0x688] sm:$0xff]
    %v536 = vld [vmem:[#allocation5 + $0x690] sm:$0xff]
    %v537 = vld [vmem:[#allocation5 + $0x698] sm:$0xff]
    %v538 = vld [vmem:[#allocation5 + $0x6a0] sm:$0xff]
    %v539 = vld [vmem:[#allocation5 + $0x6a8] sm:$0xff]
    %v540 = vld [vmem:[#allocation5 + $0x6b0] sm:$0xff]
    %v541 = vld [vmem:[#allocation5 + $0x6b8] sm:$0xff]
    %v542 = vld [vmem:[#allocation5 + $0x6c0] sm:$0xff]
    %v543 = vld [vmem:[#allocation5 + $0x6c8] sm:$0xff]
    %v544 = vld [vmem:[#allocation5 + $0x6d0] sm:$0xff]
    %v545 = vld [vmem:[#allocation5 + $0x6d8] sm:$0xff]
    %v546 = vld [vmem:[#allocation5 + $0x6e0] sm:$0xff]
    %v547 = vld [vmem:[#allocation5 + $0x6e8] sm:$0xff]
    %v548 = vld [vmem:[#allocation5 + $0x6f0] sm:$0xff]
    %v549 = vld [vmem:[#allocation5 + $0x6f8] sm:$0xff]
    %v550 = vld [vmem:[#allocation5 + $0x700] sm:$0xff]
    %v551 = vld [vmem:[#allocation5 + $0x708] sm:$0xff]
    %v552 = vld [vmem:[#allocation5 + $0x710] sm:$0xff]
    %v553 = vld [vmem:[#allocation5 + $0x718] sm:$0xff]
    %v554 = vld [vmem:[#allocation5 + $0x720] sm:$0xff]
    %v555 = vld [vmem:[#allocation5 + $0x728] sm:$0xff]
    %v556 = vld [vmem:[#allocation5 + $0x730] sm:$0xff]
    %v557 = vld [vmem:[#allocation5 + $0x738] sm:$0xff]
    %v558 = vld [vmem:[#allocation5 + $0x740] sm:$0xff]
    %v559 = vld [vmem:[#allocation5 + $0x748] sm:$0xff]
    %v560 = vld [vmem:[#allocation5 + $0x750] sm:$0xff]
    %v561 = vld [vmem:[#allocation5 + $0x758] sm:$0xff]
    %v562 = vld [vmem:[#allocation5 + $0x760] sm:$0xff]
    %v563 = vld [vmem:[#allocation5 + $0x768] sm:$0xff]
    %v564 = vld [vmem:[#allocation5 + $0x770] sm:$0xff]
    %v565 = vld [vmem:[#allocation5 + $0x778] sm:$0xff]
    %v566 = vld [vmem:[#allocation5 + $0x780] sm:$0xff]
    %v567 = vld [vmem:[#allocation5 + $0x788] sm:$0xff]
    %v568 = vld [vmem:[#allocation5 + $0x790] sm:$0xff]
    %v569 = vld [vmem:[#allocation5 + $0x798] sm:$0xff]
    %v570 = vld [vmem:[#allocation5 + $0x7a0] sm:$0xff]
    %v571 = vld [vmem:[#allocation5 + $0x7a8] sm:$0xff]
    %v572 = vld [vmem:[#allocation5 + $0x7b0] sm:$0xff]
    %v573 = vld [vmem:[#allocation5 + $0x7b8] sm:$0xff]
    %v574 = vld [vmem:[#allocation5 + $0x7c0] sm:$0xff]
    %v575 = vld [vmem:[#allocation5 + $0x7c8] sm:$0xff]
    %v576 = vld [vmem:[#allocation5 + $0x7d0] sm:$0xff]
    %v577 = vld [vmem:[#allocation5 + $0x7d8] sm:$0xff]
    %v578 = vld [vmem:[#allocation5 + $0x7e0] sm:$0xff]
    %v579 = vld [vmem:[#allocation5 + $0x7e8] sm:$0xff]
    %v580 = vld [vmem:[#allocation5 + $0x7f0] sm:$0xff]
    %v581 = vld [vmem:[#allocation5 + $0x7f8] sm:$0xff]
    %v582 = vld [vmem:[#allocation5 + $0x800] sm:$0xff]
    %v583 = vld [vmem:[#allocation5 + $0x808] sm:$0xff]
    %v584 = vld [vmem:[#allocation5 + $0x810] sm:$0xff]
    %v585 = vld [vmem:[#allocation5 + $0x818] sm:$0xff]
    %v586 = vld [vmem:[#allocation5 + $0x820] sm:$0xff]
    %v587 = vld [vmem:[#allocation5 + $0x828] sm:$0xff]
    %v588 = vld [vmem:[#allocation5 + $0x830] sm:$0xff]
    %v589 = vld [vmem:[#allocation5 + $0x838] sm:$0xff]
    %v590 = vld [vmem:[#allocation5 + $0x840] sm:$0xff]
    %v591 = vld [vmem:[#allocation5 + $0x848] sm:$0xff]
    %v592 = vld [vmem:[#allocation5 + $0x850] sm:$0xff]
    %v593 = vld [vmem:[#allocation5 + $0x858] sm:$0xff]
    %v594 = vld [vmem:[#allocation5 + $0x860] sm:$0xff]
    %v595 = vld [vmem:[#allocation5 + $0x868] sm:$0xff]
    %v596 = vld [vmem:[#allocation5 + $0x870] sm:$0xff]
    %v597 = vld [vmem:[#allocation5 + $0x878] sm:$0xff]
    %v598 = vld [vmem:[#allocation5 + $0x880] sm:$0xff]
    %v599 = vld [vmem:[#allocation5 + $0x888] sm:$0xff]
    %v600 = vld [vmem:[#allocation5 + $0x890] sm:$0xff]
    %v601 = vld [vmem:[#allocation5 + $0x898] sm:$0xff]
    %v602 = vld [vmem:[#allocation5 + $0x8a0] sm:$0xff]
    %v603 = vld [vmem:[#allocation5 + $0x8a8] sm:$0xff]
    %v604 = vld [vmem:[#allocation5 + $0x8b0] sm:$0xff]
    %v605 = vld [vmem:[#allocation5 + $0x8b8] sm:$0xff]
    %v606 = vld [vmem:[#allocation5 + $0x8c0] sm:$0xff]
    %v607 = vld [vmem:[#allocation5 + $0x8c8] sm:$0xff]
    %v608 = vld [vmem:[#allocation5 + $0x8d0] sm:$0xff]
    %v609 = vld [vmem:[#allocation5 + $0x8d8] sm:$0xff]
    %v610 = vld [vmem:[#allocation5 + $0x8e0] sm:$0xff]
    %v611 = vld [vmem:[#allocation5 + $0x8e8] sm:$0xff]
    %v612 = vld [vmem:[#allocation5 + $0x8f0] sm:$0xff]
    %v613 = vld [vmem:[#allocation5 + $0x8f8] sm:$0xff]
    %v614 = vld [vmem:[#allocation5 + $0x900] sm:$0xff]
    %v615 = vld [vmem:[#allocation5 + $0x908] sm:$0xff]
    %v616 = vld [vmem:[#allocation5 + $0x910] sm:$0xff]
    %v617 = vld [vmem:[#allocation5 + $0x918] sm:$0xff]
    %v618 = vld [vmem:[#allocation5 + $0x920] sm:$0xff]
    %v619 = vld [vmem:[#allocation5 + $0x928] sm:$0xff]
    %v620 = vld [vmem:[#allocation5 + $0x930] sm:$0xff]
    %v621 = vld [vmem:[#allocation5 + $0x938] sm:$0xff]
    %v622 = vld [vmem:[#allocation5 + $0x940] sm:$0xff]
    %v623 = vld [vmem:[#allocation5 + $0x948] sm:$0xff]
    %v624 = vld [vmem:[#allocation5 + $0x950] sm:$0xff]
    %v625 = vld [vmem:[#allocation5 + $0x958] sm:$0xff]
    %v626 = vld [vmem:[#allocation5 + $0x960] sm:$0xff]
    %v627 = vld [vmem:[#allocation5 + $0x968] sm:$0xff]
    %v628 = vld [vmem:[#allocation5 + $0x970] sm:$0xff]
    %v629 = vld [vmem:[#allocation5 + $0x978] sm:$0xff]
    %v630 = vld [vmem:[#allocation5 + $0x980] sm:$0xff]
    %v631 = vld [vmem:[#allocation5 + $0x988] sm:$0xff]
    %v632 = vld [vmem:[#allocation5 + $0x990] sm:$0xff]
    %v633 = vld [vmem:[#allocation5 + $0x998] sm:$0xff]
    %v634 = vld [vmem:[#allocation5 + $0x9a0] sm:$0xff]
    %v635 = vld [vmem:[#allocation5 + $0x9a8] sm:$0xff]
    %v636 = vld [vmem:[#allocation5 + $0x9b0] sm:$0xff]
    %v637 = vld [vmem:[#allocation5 + $0x9b8] sm:$0xff]
    %v638 = vld [vmem:[#allocation5 + $0x9c0] sm:$0xff]
    %v639 = vld [vmem:[#allocation5 + $0x9c8] sm:$0xff]
    %v640 = vld [vmem:[#allocation5 + $0x9d0] sm:$0xff]
    %v641 = vld [vmem:[#allocation5 + $0x9d8] sm:$0xff]
    %v642 = vld [vmem:[#allocation5 + $0x9e0] sm:$0xff]
    %v643 = vld [vmem:[#allocation5 + $0x9e8] sm:$0xff]
    %v644 = vld [vmem:[#allocation5 + $0x9f0] sm:$0xff]
    %v645 = vld [vmem:[#allocation5 + $0x9f8] sm:$0xff]
    %v646 = vld [vmem:[#allocation5 + $0xa00] sm:$0xff]
    %v647 = vld [vmem:[#allocation5 + $0xa08] sm:$0xff]
    %v648 = vld [vmem:[#allocation5 + $0xa10] sm:$0xff]
    %v649 = vld [vmem:[#allocation5 + $0xa18] sm:$0xff]
    %v650 = vld [vmem:[#allocation5 + $0xa20] sm:$0xff]
    %v651 = vld [vmem:[#allocation5 + $0xa28] sm:$0xff]
    %v652 = vld [vmem:[#allocation5 + $0xa30] sm:$0xff]
    %v653 = vld [vmem:[#allocation5 + $0xa38] sm:$0xff]
    %v654 = vld [vmem:[#allocation5 + $0xa40] sm:$0xff]
    %v655 = vld [vmem:[#allocation5 + $0xa48] sm:$0xff]
    %v656 = vld [vmem:[#allocation5 + $0xa50] sm:$0xff]
    %v657 = vld [vmem:[#allocation5 + $0xa58] sm:$0xff]
    %v658 = vld [vmem:[#allocation5 + $0xa60] sm:$0xff]
    %v659 = vld [vmem:[#allocation5 + $0xa68] sm:$0xff]
    %v660 = vld [vmem:[#allocation5 + $0xa70] sm:$0xff]
    %v661 = vld [vmem:[#allocation5 + $0xa78] sm:$0xff]
    %v662 = vld [vmem:[#allocation5 + $0xa80] sm:$0xff]
    %v663 = vld [vmem:[#allocation5 + $0xa88] sm:$0xff]
    %v664 = vld [vmem:[#allocation5 + $0xa90] sm:$0xff]
    %v665 = vld [vmem:[#allocation5 + $0xa98] sm:$0xff]
    %v666 = vld [vmem:[#allocation5 + $0xaa0] sm:$0xff]
    %v667 = vld [vmem:[#allocation5 + $0xaa8] sm:$0xff]
    %v668 = vld [vmem:[#allocation5 + $0xab0] sm:$0xff]
    %v669 = vld [vmem:[#allocation5 + $0xab8] sm:$0xff]
    %v670 = vld [vmem:[#allocation5 + $0xac0] sm:$0xff]
    %v671 = vld [vmem:[#allocation5 + $0xac8] sm:$0xff]
    %v672 = vld [vmem:[#allocation5 + $0xad0] sm:$0xff]
    %v673 = vld [vmem:[#allocation5 + $0xad8] sm:$0xff]
    %v674 = vld [vmem:[#allocation5 + $0xae0] sm:$0xff]
    %v675 = vld [vmem:[#allocation5 + $0xae8] sm:$0xff]
    %v676 = vld [vmem:[#allocation5 + $0xaf0] sm:$0xff]
    %v677 = vld [vmem:[#allocation5 + $0xaf8] sm:$0xff]
    %v678 = vld [vmem:[#allocation5 + $0xb00] sm:$0xff]
    %v679 = vld [vmem:[#allocation5 + $0xb08] sm:$0xff]
    %v680 = vld [vmem:[#allocation5 + $0xb10] sm:$0xff]
    %v681 = vld [vmem:[#allocation5 + $0xb18] sm:$0xff]
    %v682 = vld [vmem:[#allocation5 + $0xb20] sm:$0xff]
    %v683 = vld [vmem:[#allocation5 + $0xb28] sm:$0xff]
    %v684 = vld [vmem:[#allocation5 + $0xb30] sm:$0xff]
    %v685 = vld [vmem:[#allocation5 + $0xb38] sm:$0xff]
    %v686 = vld [vmem:[#allocation5 + $0xb40] sm:$0xff]
    %v687 = vld [vmem:[#allocation5 + $0xb48] sm:$0xff]
    %v688 = vld [vmem:[#allocation5 + $0xb50] sm:$0xff]
    %v689 = vld [vmem:[#allocation5 + $0xb58] sm:$0xff]
    %v690 = vld [vmem:[#allocation5 + $0xb60] sm:$0xff]
    %v691 = vld [vmem:[#allocation5 + $0xb68] sm:$0xff]
    %v692 = vld [vmem:[#allocation5 + $0xb70] sm:$0xff]
    %v693 = vld [vmem:[#allocation5 + $0xb78] sm:$0xff]
    %v694 = vld [vmem:[#allocation5 + $0xb80] sm:$0xff]
    %v695 = vld [vmem:[#allocation5 + $0xb88] sm:$0xff]
    %v696 = vld [vmem:[#allocation5 + $0xb90] sm:$0xff]
    %v697 = vld [vmem:[#allocation5 + $0xb98] sm:$0xff]
    %v698 = vld [vmem:[#allocation5 + $0xba0] sm:$0xff]
    %v699 = vld [vmem:[#allocation5 + $0xba8] sm:$0xff]
    %v700 = vld [vmem:[#allocation5 + $0xbb0] sm:$0xff]
    %v701 = vld [vmem:[#allocation5 + $0xbb8] sm:$0xff]
    %v702 = vld [vmem:[#allocation5 + $0xbc0] sm:$0xff]
    %v703 = vld [vmem:[#allocation5 + $0xbc8] sm:$0xff]
    %v704 = vld [vmem:[#allocation5 + $0xbd0] sm:$0xff]
    %v705 = vld [vmem:[#allocation5 + $0xbd8] sm:$0xff]
    %v706 = vld [vmem:[#allocation5 + $0xbe0] sm:$0xff]
    %v707 = vld [vmem:[#allocation5 + $0xbe8] sm:$0xff]
    %v708 = vld [vmem:[#allocation5 + $0xbf0] sm:$0xff]
    %v709 = vld [vmem:[#allocation5 + $0xbf8] sm:$0xff]
    %v710 = vld [vmem:[#allocation5 + $0xc00] sm:$0xff]
    %v711 = vld [vmem:[#allocation5 + $0xc08] sm:$0xff]
    %v712 = vld [vmem:[#allocation5 + $0xc10] sm:$0xff]
    %v713 = vld [vmem:[#allocation5 + $0xc18] sm:$0xff]
    %v714 = vld [vmem:[#allocation5 + $0xc20] sm:$0xff]
    %v715 = vld [vmem:[#allocation5 + $0xc28] sm:$0xff]
    %v716 = vld [vmem:[#allocation5 + $0xc30] sm:$0xff]
    %v717 = vld [vmem:[#allocation5 + $0xc38] sm:$0xff]
    %v718 = vld [vmem:[#allocation5 + $0xc40] sm:$0xff]
    %v719 = vld [vmem:[#allocation5 + $0xc48] sm:$0xff]
    %v720 = vld [vmem:[#allocation5 + $0xc50] sm:$0xff]
    %v721 = vld [vmem:[#allocation5 + $0xc58] sm:$0xff]
    %v722 = vld [vmem:[#allocation5 + $0xc60] sm:$0xff]
    %v723 = vld [vmem:[#allocation5 + $0xc68] sm:$0xff]
    %v724 = vld [vmem:[#allocation5 + $0xc70] sm:$0xff]
    %v725 = vld [vmem:[#allocation5 + $0xc78] sm:$0xff]
    %v726 = vld [vmem:[#allocation5 + $0xc80] sm:$0xff]
    %v727 = vld [vmem:[#allocation5 + $0xc88] sm:$0xff]
    %v728 = vld [vmem:[#allocation5 + $0xc90] sm:$0xff]
    %v729 = vld [vmem:[#allocation5 + $0xc98] sm:$0xff]
    %v730 = vld [vmem:[#allocation5 + $0xca0] sm:$0xff]
    %v731 = vld [vmem:[#allocation5 + $0xca8] sm:$0xff]
    %v732 = vld [vmem:[#allocation5 + $0xcb0] sm:$0xff]
    %v733 = vld [vmem:[#allocation5 + $0xcb8] sm:$0xff]
    %v734 = vld [vmem:[#allocation5 + $0xcc0] sm:$0xff]
    %v735 = vld [vmem:[#allocation5 + $0xcc8] sm:$0xff]
    %v736 = vld [vmem:[#allocation5 + $0xcd0] sm:$0xff]
    %v737 = vld [vmem:[#allocation5 + $0xcd8] sm:$0xff]
    %v738 = vld [vmem:[#allocation5 + $0xce0] sm:$0xff]
    %v739 = vld [vmem:[#allocation5 + $0xce8] sm:$0xff]
    %v740 = vld [vmem:[#allocation5 + $0xcf0] sm:$0xff]
    %v741 = vld [vmem:[#allocation5 + $0xcf8] sm:$0xff]
    %v742 = vld [vmem:[#allocation5 + $0xd00] sm:$0xff]
    %v743 = vld [vmem:[#allocation5 + $0xd08] sm:$0xff]
    %v744 = vld [vmem:[#allocation5 + $0xd10] sm:$0xff]
    %v745 = vld [vmem:[#allocation5 + $0xd18] sm:$0xff]
    %v746 = vld [vmem:[#allocation5 + $0xd20] sm:$0xff]
    %v747 = vld [vmem:[#allocation5 + $0xd28] sm:$0xff]
    %v748 = vld [vmem:[#allocation5 + $0xd30] sm:$0xff]
    %v749 = vld [vmem:[#allocation5 + $0xd38] sm:$0xff]
    %v750 = vld [vmem:[#allocation5 + $0xd40] sm:$0xff]
    %v751 = vld [vmem:[#allocation5 + $0xd48] sm:$0xff]
    %v752 = vld [vmem:[#allocation5 + $0xd50] sm:$0xff]
    %v753 = vld [vmem:[#allocation5 + $0xd58] sm:$0xff]
    %v754 = vld [vmem:[#allocation5 + $0xd60] sm:$0xff]
    %v755 = vld [vmem:[#allocation5 + $0xd68] sm:$0xff]
    %v756 = vld [vmem:[#allocation5 + $0xd70] sm:$0xff]
    %v757 = vld [vmem:[#allocation5 + $0xd78] sm:$0xff]
    %v758 = vld [vmem:[#allocation5 + $0xd80] sm:$0xff]
    %v759 = vld [vmem:[#allocation5 + $0xd88] sm:$0xff]
    %v760 = vld [vmem:[#allocation5 + $0xd90] sm:$0xff]
    %v761 = vld [vmem:[#allocation5 + $0xd98] sm:$0xff]
    %v762 = vld [vmem:[#allocation5 + $0xda0] sm:$0xff]
    %v763 = vld [vmem:[#allocation5 + $0xda8] sm:$0xff]
    %v764 = vld [vmem:[#allocation5 + $0xdb0] sm:$0xff]
    %v765 = vld [vmem:[#allocation5 + $0xdb8] sm:$0xff]
    %v766 = vld [vmem:[#allocation5 + $0xdc0] sm:$0xff]
    %v767 = vld [vmem:[#allocation5 + $0xdc8] sm:$0xff]
    %v768 = vld [vmem:[#allocation5 + $0xdd0] sm:$0xff]
    %v769 = vld [vmem:[#allocation5 + $0xdd8] sm:$0xff]
    %v770 = vld [vmem:[#allocation5 + $0xde0] sm:$0xff]
    %v771 = vld [vmem:[#allocation5 + $0xde8] sm:$0xff]
    %v772 = vld [vmem:[#allocation5 + $0xdf0] sm:$0xff]
    %v773 = vld [vmem:[#allocation5 + $0xdf8] sm:$0xff]
    %v774 = vld [vmem:[#allocation5 + $0xe00] sm:$0xff]
    %v775 = vld [vmem:[#allocation5 + $0xe08] sm:$0xff]
    %v776 = vld [vmem:[#allocation5 + $0xe10] sm:$0xff]
    %v777 = vld [vmem:[#allocation5 + $0xe18] sm:$0xff]
    %v778 = vld [vmem:[#allocation5 + $0xe20] sm:$0xff]
    %v779 = vld [vmem:[#allocation5 + $0xe28] sm:$0xff]
    %v780 = vld [vmem:[#allocation5 + $0xe30] sm:$0xff]
    %v781 = vld [vmem:[#allocation5 + $0xe38] sm:$0xff]
    %v782 = vld [vmem:[#allocation5 + $0xe40] sm:$0xff]
    %v783 = vld [vmem:[#allocation5 + $0xe48] sm:$0xff]
    %v784 = vld [vmem:[#allocation5 + $0xe50] sm:$0xff]
    %v785 = vld [vmem:[#allocation5 + $0xe58] sm:$0xff]
    %v786 = vld [vmem:[#allocation5 + $0xe60] sm:$0xff]
    %v787 = vld [vmem:[#allocation5 + $0xe68] sm:$0xff]
    %v788 = vld [vmem:[#allocation5 + $0xe70] sm:$0xff]
    %v789 = vld [vmem:[#allocation5 + $0xe78] sm:$0xff]
    %v790 = vld [vmem:[#allocation5 + $0xe80] sm:$0xff]
    %v791 = vld [vmem:[#allocation5 + $0xe88] sm:$0xff]
    %v792 = vld [vmem:[#allocation5 + $0xe90] sm:$0xff]
    %v793 = vld [vmem:[#allocation5 + $0xe98] sm:$0xff]
    %v794 = vld [vmem:[#allocation5 + $0xea0] sm:$0xff]
    %v795 = vld [vmem:[#allocation5 + $0xea8] sm:$0xff]
    %v796 = vld [vmem:[#allocation5 + $0xeb0] sm:$0xff]
    %v797 = vld [vmem:[#allocation5 + $0xeb8] sm:$0xff]
    %v798 = vld [vmem:[#allocation5 + $0xec0] sm:$0xff]
    %v799 = vld [vmem:[#allocation5 + $0xec8] sm:$0xff]
    %v800 = vld [vmem:[#allocation5 + $0xed0] sm:$0xff]
    %v801 = vld [vmem:[#allocation5 + $0xed8] sm:$0xff]
    %v802 = vld [vmem:[#allocation5 + $0xee0] sm:$0xff]
    %v803 = vld [vmem:[#allocation5 + $0xee8] sm:$0xff]
    %v804 = vld [vmem:[#allocation5 + $0xef0] sm:$0xff]
    %v805 = vld [vmem:[#allocation5 + $0xef8] sm:$0xff]
    %806 = vmatpush.msra.mxu0 %v341
    %807 = vmatpush.msra.mxu0 %v340
    %808 = vmatpush.msra.mxu0 %v339
    %809 = vmatpush.msra.mxu0 %v338
    %810 = vmatpush.msra.mxu0 %v337
    %811 = vmatpush.msra.mxu0 %v336
    %812 = vmatpush.msra.mxu0 %v335
    %813 = vmatpush.msra.mxu0 %v334
    %814 = vmatpush.msra.mxu0 %v333
    %815 = vmatpush.msra.mxu0 %v332
    %816 = vmatpush.msra.mxu0 %v331
    %817 = vmatpush.msra.mxu0 %v330
    %818 = vmatpush.msra.mxu0 %v329
    %819 = vmatpush.msra.mxu0 %v328
    %820 = vmatpush.msra.mxu0 %v327
    %821 = vmatpush.msra.mxu0 %v326
    %822 = vmatmul.f32.gmra.mxu0 %v296
    %v823 = vpop.f32.mrf.mxu0
    %v824 = vadd.f32 0.0, %v823
    %825 = vdwg.mxu0
    %826 = vmatpush.msra.mxu0 %v357
    %827 = vmatpush.msra.mxu0 %v356
    %828 = vmatpush.msra.mxu0 %v355
    %829 = vmatpush.msra.mxu0 %v354
    %830 = vmatpush.msra.mxu0 %v353
    %831 = vmatpush.msra.mxu0 %v352
    %832 = vmatpush.msra.mxu0 %v351
    %833 = vmatpush.msra.mxu0 %v350
    %834 = vmatpush.msra.mxu0 %v349
    %835 = vmatpush.msra.mxu0 %v348
    %836 = vmatpush.msra.mxu0 %v347
    %837 = vmatpush.msra.mxu0 %v346
    %838 = vmatpush.msra.mxu0 %v345
    %839 = vmatpush.msra.mxu0 %v344
    %840 = vmatpush.msra.mxu0 %v343
    %841 = vmatpush.msra.mxu0 %v342
    %842 = vmatmul.f32.gmra.mxu0 %v297
    %v843 = vpop.f32.mrf.mxu0
    %v844 = vadd.f32 %v824, %v843
    %845 = vdwg.mxu0
    %846 = vmatpush.msra.mxu0 %v373
    %847 = vmatpush.msra.mxu0 %v372
    %848 = vmatpush.msra.mxu0 %v371
    %849 = vmatpush.msra.mxu0 %v370
    %850 = vmatpush.msra.mxu0 %v369
    %851 = vmatpush.msra.mxu0 %v368
    %852 = vmatpush.msra.mxu0 %v367
    %853 = vmatpush.msra.mxu0 %v366
    %854 = vmatpush.msra.mxu0 %v365
    %855 = vmatpush.msra.mxu0 %v364
    %856 = vmatpush.msra.mxu0 %v363
    %857 = vmatpush.msra.mxu0 %v362
    %858 = vmatpush.msra.mxu0 %v361
    %859 = vmatpush.msra.mxu0 %v360
    %860 = vmatpush.msra.mxu0 %v359
    %861 = vmatpush.msra.mxu0 %v358
    %862 = vmatmul.f32.gmra.mxu0 %v298
    %v863 = vpop.f32.mrf.mxu0
    %v864 = vadd.f32 %v844, %v863
    %865 = vdwg.mxu0
    %866 = vmatpush.msra.mxu0 %v389
    %867 = vmatpush.msra.mxu0 %v388
    %868 = vmatpush.msra.mxu0 %v387
    %869 = vmatpush.msra.mxu0 %v386
    %870 = vmatpush.msra.mxu0 %v385
    %871 = vmatpush.msra.mxu0 %v384
    %872 = vmatpush.msra.mxu0 %v383
    %873 = vmatpush.msra.mxu0 %v382
    %874 = vmatpush.msra.mxu0 %v381
    %875 = vmatpush.msra.mxu0 %v380
    %876 = vmatpush.msra.mxu0 %v379
    %877 = vmatpush.msra.mxu0 %v378
    %878 = vmatpush.msra.mxu0 %v377
    %879 = vmatpush.msra.mxu0 %v376
    %880 = vmatpush.msra.mxu0 %v375
    %881 = vmatpush.msra.mxu0 %v374
    %882 = vmatmul.f32.gmra.mxu0 %v299
    %v883 = vpop.f32.mrf.mxu0
    %v884 = vadd.f32 %v864, %v883
    %885 = vdwg.mxu0
    %886 = vmatpush.msra.mxu0 %v405
    %887 = vmatpush.msra.mxu0 %v404
    %888 = vmatpush.msra.mxu0 %v403
    %889 = vmatpush.msra.mxu0 %v402
    %890 = vmatpush.msra.mxu0 %v401
    %891 = vmatpush.msra.mxu0 %v400
    %892 = vmatpush.msra.mxu0 %v399
    %893 = vmatpush.msra.mxu0 %v398
    %894 = vmatpush.msra.mxu0 %v397
    %895 = vmatpush.msra.mxu0 %v396
    %896 = vmatpush.msra.mxu0 %v395
    %897 = vmatpush.msra.mxu0 %v394
    %898 = vmatpush.msra.mxu0 %v393
    %899 = vmatpush.msra.mxu0 %v392
    %900 = vmatpush.msra.mxu0 %v391
    %901 = vmatpush.msra.mxu0 %v390
    %902 = vmatmul.f32.gmra.mxu0 %v300
    %v903 = vpop.f32.mrf.mxu0
    %v904 = vadd.f32 %v884, %v903
    %905 = vdwg.mxu0
    %906 = vmatpush.msra.mxu0 %v421
    %907 = vmatpush.msra.mxu0 %v420
    %908 = vmatpush.msra.mxu0 %v419
    %909 = vmatpush.msra.mxu0 %v418
    %910 = vmatpush.msra.mxu0 %v417
    %911 = vmatpush.msra.mxu0 %v416
    %912 = vmatpush.msra.mxu0 %v415
    %913 = vmatpush.msra.mxu0 %v414
    %914 = vmatpush.msra.mxu0 %v413
    %915 = vmatpush.msra.mxu0 %v412
    %916 = vmatpush.msra.mxu0 %v411
    %917 = vmatpush.msra.mxu0 %v410
    %918 = vmatpush.msra.mxu0 %v409
    %919 = vmatpush.msra.mxu0 %v408
    %920 = vmatpush.msra.mxu0 %v407
    %921 = vmatpush.msra.mxu0 %v406
    %922 = vmatmul.f32.gmra.mxu0 %v301
    %v923 = vpop.f32.mrf.mxu0
    %v924 = vadd.f32 %v904, %v923
    %925 = vdwg.mxu0
    %926 = vmatpush.msra.mxu0 %v437
    %927 = vmatpush.msra.mxu0 %v436
    %928 = vmatpush.msra.mxu0 %v435
    %929 = vmatpush.msra.mxu0 %v434
    %930 = vmatpush.msra.mxu0 %v433
    %931 = vmatpush.msra.mxu0 %v432
    %932 = vmatpush.msra.mxu0 %v431
    %933 = vmatpush.msra.mxu0 %v430
    %934 = vmatpush.msra.mxu0 %v429
    %935 = vmatpush.msra.mxu0 %v428
    %936 = vmatpush.msra.mxu0 %v427
    %937 = vmatpush.msra.mxu0 %v426
    %938 = vmatpush.msra.mxu0 %v425
    %939 = vmatpush.msra.mxu0 %v424
    %940 = vmatpush.msra.mxu0 %v423
    %941 = vmatpush.msra.mxu0 %v422
    %942 = vmatmul.f32.gmra.mxu0 %v302
    %v943 = vpop.f32.mrf.mxu0
    %v944 = vadd.f32 %v924, %v943
    %945 = vdwg.mxu0
    %946 = vmatpush.msra.mxu0 %v453
    %947 = vmatpush.msra.mxu0 %v452
    %948 = vmatpush.msra.mxu0 %v451
    %949 = vmatpush.msra.mxu0 %v450
    %950 = vmatpush.msra.mxu0 %v449
    %951 = vmatpush.msra.mxu0 %v448
    %952 = vmatpush.msra.mxu0 %v447
    %953 = vmatpush.msra.mxu0 %v446
    %954 = vmatpush.msra.mxu0 %v445
    %955 = vmatpush.msra.mxu0 %v444
    %956 = vmatpush.msra.mxu0 %v443
    %957 = vmatpush.msra.mxu0 %v442
    %958 = vmatpush.msra.mxu0 %v441
    %959 = vmatpush.msra.mxu0 %v440
    %960 = vmatpush.msra.mxu0 %v439
    %961 = vmatpush.msra.mxu0 %v438
    %962 = vmatmul.f32.gmra.mxu0 %v303
    %v963 = vpop.f32.mrf.mxu0
    %v964 = vadd.f32 %v944, %v963
    %965 = vdwg.mxu0
    %966 = vmatpush.msra.mxu0 %v469
    %967 = vmatpush.msra.mxu0 %v468
    %968 = vmatpush.msra.mxu0 %v467
    %969 = vmatpush.msra.mxu0 %v466
    %970 = vmatpush.msra.mxu0 %v465
    %971 = vmatpush.msra.mxu0 %v464
    %972 = vmatpush.msra.mxu0 %v463
    %973 = vmatpush.msra.mxu0 %v462
    %974 = vmatpush.msra.mxu0 %v461
    %975 = vmatpush.msra.mxu0 %v460
    %976 = vmatpush.msra.mxu0 %v459
    %977 = vmatpush.msra.mxu0 %v458
    %978 = vmatpush.msra.mxu0 %v457
    %979 = vmatpush.msra.mxu0 %v456
    %980 = vmatpush.msra.mxu0 %v455
    %981 = vmatpush.msra.mxu0 %v454
    %982 = vmatmul.f32.gmra.mxu0 %v304
    %v983 = vpop.f32.mrf.mxu0
    %v984 = vadd.f32 %v964, %v983
    %985 = vdwg.mxu0
    %986 = vmatpush.msra.mxu0 %v485
    %987 = vmatpush.msra.mxu0 %v484
    %988 = vmatpush.msra.mxu0 %v483
    %989 = vmatpush.msra.mxu0 %v482
    %990 = vmatpush.msra.mxu0 %v481
    %991 = vmatpush.msra.mxu0 %v480
    %992 = vmatpush.msra.mxu0 %v479
    %993 = vmatpush.msra.mxu0 %v478
    %994 = vmatpush.msra.mxu0 %v477
    %995 = vmatpush.msra.mxu0 %v476
    %996 = vmatpush.msra.mxu0 %v475
    %997 = vmatpush.msra.mxu0 %v474
    %998 = vmatpush.msra.mxu0 %v473
    %999 = vmatpush.msra.mxu0 %v472
    %1000 = vmatpush.msra.mxu0 %v471
    %1001 = vmatpush.msra.mxu0 %v470
    %1002 = vmatmul.f32.gmra.mxu0 %v305
    %v1003 = vpop.f32.mrf.mxu0
    %v1004 = vadd.f32 %v984, %v1003
    %1005 = vdwg.mxu0
    %1006 = vmatpush.msra.mxu0 %v501
    %1007 = vmatpush.msra.mxu0 %v500
    %1008 = vmatpush.msra.mxu0 %v499
    %1009 = vmatpush.msra.mxu0 %v498
    %1010 = vmatpush.msra.mxu0 %v497
    %1011 = vmatpush.msra.mxu0 %v496
    %1012 = vmatpush.msra.mxu0 %v495
    %1013 = vmatpush.msra.mxu0 %v494
    %1014 = vmatpush.msra.mxu0 %v493
    %1015 = vmatpush.msra.mxu0 %v492
    %1016 = vmatpush.msra.mxu0 %v491
    %1017 = vmatpush.msra.mxu0 %v490
    %1018 = vmatpush.msra.mxu0 %v489
    %1019 = vmatpush.msra.mxu0 %v488
    %1020 = vmatpush.msra.mxu0 %v487
    %1021 = vmatpush.msra.mxu0 %v486
    %1022 = vmatmul.f32.gmra.mxu0 %v306
    %v1023 = vpop.f32.mrf.mxu0
    %v1024 = vadd.f32 %v1004, %v1023
    %1025 = vdwg.mxu0
    %1026 = vmatpush.msra.mxu0 %v517
    %1027 = vmatpush.msra.mxu0 %v516
    %1028 = vmatpush.msra.mxu0 %v515
    %1029 = vmatpush.msra.mxu0 %v514
    %1030 = vmatpush.msra.mxu0 %v513
    %1031 = vmatpush.msra.mxu0 %v512
    %1032 = vmatpush.msra.mxu0 %v511
    %1033 = vmatpush.msra.mxu0 %v510
    %1034 = vmatpush.msra.mxu0 %v509
    %1035 = vmatpush.msra.mxu0 %v508
    %1036 = vmatpush.msra.mxu0 %v507
    %1037 = vmatpush.msra.mxu0 %v506
    %1038 = vmatpush.msra.mxu0 %v505
    %1039 = vmatpush.msra.mxu0 %v504
    %1040 = vmatpush.msra.mxu0 %v503
    %1041 = vmatpush.msra.mxu0 %v502
    %1042 = vmatmul.f32.gmra.mxu0 %v307
    %v1043 = vpop.f32.mrf.mxu0
    %v1044 = vadd.f32 %v1024, %v1043
    %1045 = vdwg.mxu0
    %1046 = vmatpush.msra.mxu0 %v533
    %1047 = vmatpush.msra.mxu0 %v532
    %1048 = vmatpush.msra.mxu0 %v531
    %1049 = vmatpush.msra.mxu0 %v530
    %1050 = vmatpush.msra.mxu0 %v529
    %1051 = vmatpush.msra.mxu0 %v528
    %1052 = vmatpush.msra.mxu0 %v527
    %1053 = vmatpush.msra.mxu0 %v526
    %1054 = vmatpush.msra.mxu0 %v525
    %1055 = vmatpush.msra.mxu0 %v524
    %1056 = vmatpush.msra.mxu0 %v523
    %1057 = vmatpush.msra.mxu0 %v522
    %1058 = vmatpush.msra.mxu0 %v521
    %1059 = vmatpush.msra.mxu0 %v520
    %1060 = vmatpush.msra.mxu0 %v519
    %1061 = vmatpush.msra.mxu0 %v518
    %1062 = vmatmul.f32.gmra.mxu0 %v308
    %v1063 = vpop.f32.mrf.mxu0
    %v1064 = vadd.f32 %v1044, %v1063
    %1065 = vdwg.mxu0
    %1066 = vmatpush.msra.mxu0 %v549
    %1067 = vmatpush.msra.mxu0 %v548
    %1068 = vmatpush.msra.mxu0 %v547
    %1069 = vmatpush.msra.mxu0 %v546
    %1070 = vmatpush.msra.mxu0 %v545
    %1071 = vmatpush.msra.mxu0 %v544
    %1072 = vmatpush.msra.mxu0 %v543
    %1073 = vmatpush.msra.mxu0 %v542
    %1074 = vmatpush.msra.mxu0 %v541
    %1075 = vmatpush.msra.mxu0 %v540
    %1076 = vmatpush.msra.mxu0 %v539
    %1077 = vmatpush.msra.mxu0 %v538
    %1078 = vmatpush.msra.mxu0 %v537
    %1079 = vmatpush.msra.mxu0 %v536
    %1080 = vmatpush.msra.mxu0 %v535
    %1081 = vmatpush.msra.mxu0 %v534
    %1082 = vmatmul.f32.gmra.mxu0 %v309
    %v1083 = vpop.f32.mrf.mxu0
    %v1084 = vadd.f32 %v1064, %v1083
    %1085 = vdwg.mxu0
    %1086 = vmatpush.msra.mxu0 %v565
    %1087 = vmatpush.msra.mxu0 %v564
    %1088 = vmatpush.msra.mxu0 %v563
    %1089 = vmatpush.msra.mxu0 %v562
    %1090 = vmatpush.msra.mxu0 %v561
    %1091 = vmatpush.msra.mxu0 %v560
    %1092 = vmatpush.msra.mxu0 %v559
    %1093 = vmatpush.msra.mxu0 %v558
    %1094 = vmatpush.msra.mxu0 %v557
    %1095 = vmatpush.msra.mxu0 %v556
    %1096 = vmatpush.msra.mxu0 %v555
    %1097 = vmatpush.msra.mxu0 %v554
    %1098 = vmatpush.msra.mxu0 %v553
    %1099 = vmatpush.msra.mxu0 %v552
    %1100 = vmatpush.msra.mxu0 %v551
    %1101 = vmatpush.msra.mxu0 %v550
    %1102 = vmatmul.f32.gmra.mxu0 %v310
    %v1103 = vpop.f32.mrf.mxu0
    %v1104 = vadd.f32 %v1084, %v1103
    %1105 = vdwg.mxu0
    %1106 = vmatpush.msra.mxu0 %v581
    %1107 = vmatpush.msra.mxu0 %v580
    %1108 = vmatpush.msra.mxu0 %v579
    %1109 = vmatpush.msra.mxu0 %v578
    %1110 = vmatpush.msra.mxu0 %v577
    %1111 = vmatpush.msra.mxu0 %v576
    %1112 = vmatpush.msra.mxu0 %v575
    %1113 = vmatpush.msra.mxu0 %v574
    %1114 = vmatpush.msra.mxu0 %v573
    %1115 = vmatpush.msra.mxu0 %v572
    %1116 = vmatpush.msra.mxu0 %v571
    %1117 = vmatpush.msra.mxu0 %v570
    %1118 = vmatpush.msra.mxu0 %v569
    %1119 = vmatpush.msra.mxu0 %v568
    %1120 = vmatpush.msra.mxu0 %v567
    %1121 = vmatpush.msra.mxu0 %v566
    %1122 = vmatmul.f32.gmra.mxu0 %v311
    %v1123 = vpop.f32.mrf.mxu0
    %v1124 = vadd.f32 %v1104, %v1123
    %1125 = vdwg.mxu0
    %1126 = vmatpush.msra.mxu0 %v597
    %1127 = vmatpush.msra.mxu0 %v596
    %1128 = vmatpush.msra.mxu0 %v595
    %1129 = vmatpush.msra.mxu0 %v594
    %1130 = vmatpush.msra.mxu0 %v593
    %1131 = vmatpush.msra.mxu0 %v592
    %1132 = vmatpush.msra.mxu0 %v591
    %1133 = vmatpush.msra.mxu0 %v590
    %1134 = vmatpush.msra.mxu0 %v589
    %1135 = vmatpush.msra.mxu0 %v588
    %1136 = vmatpush.msra.mxu0 %v587
    %1137 = vmatpush.msra.mxu0 %v586
    %1138 = vmatpush.msra.mxu0 %v585
    %1139 = vmatpush.msra.mxu0 %v584
    %1140 = vmatpush.msra.mxu0 %v583
    %1141 = vmatpush.msra.mxu0 %v582
    %1142 = vmatmul.f32.gmra.mxu0 %v312
    %v1143 = vpop.f32.mrf.mxu0
    %v1144 = vadd.f32 %v1124, %v1143
    %1145 = vdwg.mxu0
    %1146 = vmatpush.msra.mxu0 %v613
    %1147 = vmatpush.msra.mxu0 %v612
    %1148 = vmatpush.msra.mxu0 %v611
    %1149 = vmatpush.msra.mxu0 %v610
    %1150 = vmatpush.msra.mxu0 %v609
    %1151 = vmatpush.msra.mxu0 %v608
    %1152 = vmatpush.msra.mxu0 %v607
    %1153 = vmatpush.msra.mxu0 %v606
    %1154 = vmatpush.msra.mxu0 %v605
    %1155 = vmatpush.msra.mxu0 %v604
    %1156 = vmatpush.msra.mxu0 %v603
    %1157 = vmatpush.msra.mxu0 %v602
    %1158 = vmatpush.msra.mxu0 %v601
    %1159 = vmatpush.msra.mxu0 %v600
    %1160 = vmatpush.msra.mxu0 %v599
    %1161 = vmatpush.msra.mxu0 %v598
    %1162 = vmatmul.f32.gmra.mxu0 %v313
    %v1163 = vpop.f32.mrf.mxu0
    %v1164 = vadd.f32 %v1144, %v1163
    %1165 = vdwg.mxu0
    %1166 = vmatpush.msra.mxu0 %v629
    %1167 = vmatpush.msra.mxu0 %v628
    %1168 = vmatpush.msra.mxu0 %v627
    %1169 = vmatpush.msra.mxu0 %v626
    %1170 = vmatpush.msra.mxu0 %v625
    %1171 = vmatpush.msra.mxu0 %v624
    %1172 = vmatpush.msra.mxu0 %v623
    %1173 = vmatpush.msra.mxu0 %v622
    %1174 = vmatpush.msra.mxu0 %v621
    %1175 = vmatpush.msra.mxu0 %v620
    %1176 = vmatpush.msra.mxu0 %v619
    %1177 = vmatpush.msra.mxu0 %v618
    %1178 = vmatpush.msra.mxu0 %v617
    %1179 = vmatpush.msra.mxu0 %v616
    %1180 = vmatpush.msra.mxu0 %v615
    %1181 = vmatpush.msra.mxu0 %v614
    %1182 = vmatmul.f32.gmra.mxu0 %v314
    %v1183 = vpop.f32.mrf.mxu0
    %v1184 = vadd.f32 %v1164, %v1183
    %1185 = vdwg.mxu0
    %1186 = vmatpush.msra.mxu0 %v645
    %1187 = vmatpush.msra.mxu0 %v644
    %1188 = vmatpush.msra.mxu0 %v643
    %1189 = vmatpush.msra.mxu0 %v642
    %1190 = vmatpush.msra.mxu0 %v641
    %1191 = vmatpush.msra.mxu0 %v640
    %1192 = vmatpush.msra.mxu0 %v639
    %1193 = vmatpush.msra.mxu0 %v638
    %1194 = vmatpush.msra.mxu0 %v637
    %1195 = vmatpush.msra.mxu0 %v636
    %1196 = vmatpush.msra.mxu0 %v635
    %1197 = vmatpush.msra.mxu0 %v634
    %1198 = vmatpush.msra.mxu0 %v633
    %1199 = vmatpush.msra.mxu0 %v632
    %1200 = vmatpush.msra.mxu0 %v631
    %1201 = vmatpush.msra.mxu0 %v630
    %1202 = vmatmul.f32.gmra.mxu0 %v315
    %v1203 = vpop.f32.mrf.mxu0
    %v1204 = vadd.f32 %v1184, %v1203
    %1205 = vdwg.mxu0
    %1206 = vmatpush.msra.mxu0 %v661
    %1207 = vmatpush.msra.mxu0 %v660
    %1208 = vmatpush.msra.mxu0 %v659
    %1209 = vmatpush.msra.mxu0 %v658
    %1210 = vmatpush.msra.mxu0 %v657
    %1211 = vmatpush.msra.mxu0 %v656
    %1212 = vmatpush.msra.mxu0 %v655
    %1213 = vmatpush.msra.mxu0 %v654
    %1214 = vmatpush.msra.mxu0 %v653
    %1215 = vmatpush.msra.mxu0 %v652
    %1216 = vmatpush.msra.mxu0 %v651
    %1217 = vmatpush.msra.mxu0 %v650
    %1218 = vmatpush.msra.mxu0 %v649
    %1219 = vmatpush.msra.mxu0 %v648
    %1220 = vmatpush.msra.mxu0 %v647
    %1221 = vmatpush.msra.mxu0 %v646
    %1222 = vmatmul.f32.gmra.mxu0 %v316
    %v1223 = vpop.f32.mrf.mxu0
    %v1224 = vadd.f32 %v1204, %v1223
    %1225 = vdwg.mxu0
    %1226 = vmatpush.msra.mxu0 %v677
    %1227 = vmatpush.msra.mxu0 %v676
    %1228 = vmatpush.msra.mxu0 %v675
    %1229 = vmatpush.msra.mxu0 %v674
    %1230 = vmatpush.msra.mxu0 %v673
    %1231 = vmatpush.msra.mxu0 %v672
    %1232 = vmatpush.msra.mxu0 %v671
    %1233 = vmatpush.msra.mxu0 %v670
    %1234 = vmatpush.msra.mxu0 %v669
    %1235 = vmatpush.msra.mxu0 %v668
    %1236 = vmatpush.msra.mxu0 %v667
    %1237 = vmatpush.msra.mxu0 %v666
    %1238 = vmatpush.msra.mxu0 %v665
    %1239 = vmatpush.msra.mxu0 %v664
    %1240 = vmatpush.msra.mxu0 %v663
    %1241 = vmatpush.msra.mxu0 %v662
    %1242 = vmatmul.f32.gmra.mxu0 %v317
    %v1243 = vpop.f32.mrf.mxu0
    %v1244 = vadd.f32 %v1224, %v1243
    %1245 = vdwg.mxu0
    %1246 = vmatpush.msra.mxu0 %v693
    %1247 = vmatpush.msra.mxu0 %v692
    %1248 = vmatpush.msra.mxu0 %v691
    %1249 = vmatpush.msra.mxu0 %v690
    %1250 = vmatpush.msra.mxu0 %v689
    %1251 = vmatpush.msra.mxu0 %v688
    %1252 = vmatpush.msra.mxu0 %v687
    %1253 = vmatpush.msra.mxu0 %v686
    %1254 = vmatpush.msra.mxu0 %v685
    %1255 = vmatpush.msra.mxu0 %v684
    %1256 = vmatpush.msra.mxu0 %v683
    %1257 = vmatpush.msra.mxu0 %v682
    %1258 = vmatpush.msra.mxu0 %v681
    %1259 = vmatpush.msra.mxu0 %v680
    %1260 = vmatpush.msra.mxu0 %v679
    %1261 = vmatpush.msra.mxu0 %v678
    %1262 = vmatmul.f32.gmra.mxu0 %v318
    %v1263 = vpop.f32.mrf.mxu0
    %v1264 = vadd.f32 %v1244, %v1263
    %1265 = vdwg.mxu0
    %1266 = vmatpush.msra.mxu0 %v709
    %1267 = vmatpush.msra.mxu0 %v708
    %1268 = vmatpush.msra.mxu0 %v707
    %1269 = vmatpush.msra.mxu0 %v706
    %1270 = vmatpush.msra.mxu0 %v705
    %1271 = vmatpush.msra.mxu0 %v704
    %1272 = vmatpush.msra.mxu0 %v703
    %1273 = vmatpush.msra.mxu0 %v702
    %1274 = vmatpush.msra.mxu0 %v701
    %1275 = vmatpush.msra.mxu0 %v700
    %1276 = vmatpush.msra.mxu0 %v699
    %1277 = vmatpush.msra.mxu0 %v698
    %1278 = vmatpush.msra.mxu0 %v697
    %1279 = vmatpush.msra.mxu0 %v696
    %1280 = vmatpush.msra.mxu0 %v695
    %1281 = vmatpush.msra.mxu0 %v694
    %1282 = vmatmul.f32.gmra.mxu0 %v319
    %v1283 = vpop.f32.mrf.mxu0
    %v1284 = vadd.f32 %v1264, %v1283
    %1285 = vdwg.mxu0
    %1286 = vmatpush.msra.mxu0 %v725
    %1287 = vmatpush.msra.mxu0 %v724
    %1288 = vmatpush.msra.mxu0 %v723
    %1289 = vmatpush.msra.mxu0 %v722
    %1290 = vmatpush.msra.mxu0 %v721
    %1291 = vmatpush.msra.mxu0 %v720
    %1292 = vmatpush.msra.mxu0 %v719
    %1293 = vmatpush.msra.mxu0 %v718
    %1294 = vmatpush.msra.mxu0 %v717
    %1295 = vmatpush.msra.mxu0 %v716
    %1296 = vmatpush.msra.mxu0 %v715
    %1297 = vmatpush.msra.mxu0 %v714
    %1298 = vmatpush.msra.mxu0 %v713
    %1299 = vmatpush.msra.mxu0 %v712
    %1300 = vmatpush.msra.mxu0 %v711
    %1301 = vmatpush.msra.mxu0 %v710
    %1302 = vmatmul.f32.gmra.mxu0 %v320
    %v1303 = vpop.f32.mrf.mxu0
    %v1304 = vadd.f32 %v1284, %v1303
    %1305 = vdwg.mxu0
    %1306 = vmatpush.msra.mxu0 %v741
    %1307 = vmatpush.msra.mxu0 %v740
    %1308 = vmatpush.msra.mxu0 %v739
    %1309 = vmatpush.msra.mxu0 %v738
    %1310 = vmatpush.msra.mxu0 %v737
    %1311 = vmatpush.msra.mxu0 %v736
    %1312 = vmatpush.msra.mxu0 %v735
    %1313 = vmatpush.msra.mxu0 %v734
    %1314 = vmatpush.msra.mxu0 %v733
    %1315 = vmatpush.msra.mxu0 %v732
    %1316 = vmatpush.msra.mxu0 %v731
    %1317 = vmatpush.msra.mxu0 %v730
    %1318 = vmatpush.msra.mxu0 %v729
    %1319 = vmatpush.msra.mxu0 %v728
    %1320 = vmatpush.msra.mxu0 %v727
    %1321 = vmatpush.msra.mxu0 %v726
    %1322 = vmatmul.f32.gmra.mxu0 %v321
    %v1323 = vpop.f32.mrf.mxu0
    %v1324 = vadd.f32 %v1304, %v1323
    %1325 = vdwg.mxu0
    %1326 = vmatpush.msra.mxu0 %v757
    %1327 = vmatpush.msra.mxu0 %v756
    %1328 = vmatpush.msra.mxu0 %v755
    %1329 = vmatpush.msra.mxu0 %v754
    %1330 = vmatpush.msra.mxu0 %v753
    %1331 = vmatpush.msra.mxu0 %v752
    %1332 = vmatpush.msra.mxu0 %v751
    %1333 = vmatpush.msra.mxu0 %v750
    %1334 = vmatpush.msra.mxu0 %v749
    %1335 = vmatpush.msra.mxu0 %v748
    %1336 = vmatpush.msra.mxu0 %v747
    %1337 = vmatpush.msra.mxu0 %v746
    %1338 = vmatpush.msra.mxu0 %v745
    %1339 = vmatpush.msra.mxu0 %v744
    %1340 = vmatpush.msra.mxu0 %v743
    %1341 = vmatpush.msra.mxu0 %v742
    %1342 = vmatmul.f32.gmra.mxu0 %v322
    %v1343 = vpop.f32.mrf.mxu0
    %v1344 = vadd.f32 %v1324, %v1343
    %1345 = vdwg.mxu0
    %1346 = vmatpush.msra.mxu0 %v773
    %1347 = vmatpush.msra.mxu0 %v772
    %1348 = vmatpush.msra.mxu0 %v771
    %1349 = vmatpush.msra.mxu0 %v770
    %1350 = vmatpush.msra.mxu0 %v769
    %1351 = vmatpush.msra.mxu0 %v768
    %1352 = vmatpush.msra.mxu0 %v767
    %1353 = vmatpush.msra.mxu0 %v766
    %1354 = vmatpush.msra.mxu0 %v765
    %1355 = vmatpush.msra.mxu0 %v764
    %1356 = vmatpush.msra.mxu0 %v763
    %1357 = vmatpush.msra.mxu0 %v762
    %1358 = vmatpush.msra.mxu0 %v761
    %1359 = vmatpush.msra.mxu0 %v760
    %1360 = vmatpush.msra.mxu0 %v759
    %1361 = vmatpush.msra.mxu0 %v758
    %1362 = vmatmul.f32.gmra.mxu0 %v323
    %v1363 = vpop.f32.mrf.mxu0
    %v1364 = vadd.f32 %v1344, %v1363
    %1365 = vdwg.mxu0
    %1366 = vmatpush.msra.mxu0 %v789
    %1367 = vmatpush.msra.mxu0 %v788
    %1368 = vmatpush.msra.mxu0 %v787
    %1369 = vmatpush.msra.mxu0 %v786
    %1370 = vmatpush.msra.mxu0 %v785
    %1371 = vmatpush.msra.mxu0 %v784
    %1372 = vmatpush.msra.mxu0 %v783
    %1373 = vmatpush.msra.mxu0 %v782
    %1374 = vmatpush.msra.mxu0 %v781
    %1375 = vmatpush.msra.mxu0 %v780
    %1376 = vmatpush.msra.mxu0 %v779
    %1377 = vmatpush.msra.mxu0 %v778
    %1378 = vmatpush.msra.mxu0 %v777
    %1379 = vmatpush.msra.mxu0 %v776
    %1380 = vmatpush.msra.mxu0 %v775
    %1381 = vmatpush.msra.mxu0 %v774
    %1382 = vmatmul.f32.gmra.mxu0 %v324
    %v1383 = vpop.f32.mrf.mxu0
    %v1384 = vadd.f32 %v1364, %v1383
    %1385 = vdwg.mxu0
    %1386 = vmatpush.msra.mxu0 %v805
    %1387 = vmatpush.msra.mxu0 %v804
    %1388 = vmatpush.msra.mxu0 %v803
    %1389 = vmatpush.msra.mxu0 %v802
    %1390 = vmatpush.msra.mxu0 %v801
    %1391 = vmatpush.msra.mxu0 %v800
    %1392 = vmatpush.msra.mxu0 %v799
    %1393 = vmatpush.msra.mxu0 %v798
    %1394 = vmatpush.msra.mxu0 %v797
    %1395 = vmatpush.msra.mxu0 %v796
    %1396 = vmatpush.msra.mxu0 %v795
    %1397 = vmatpush.msra.mxu0 %v794
    %1398 = vmatpush.msra.mxu0 %v793
    %1399 = vmatpush.msra.mxu0 %v792
    %1400 = vmatpush.msra.mxu0 %v791
    %1401 = vmatpush.msra.mxu0 %v790
    %1402 = vmatmul.f32.gmra.mxu0 %v325
    %v1403 = vpop.f32.mrf.mxu0
    %v1404 = vadd.f32 %v1384, %v1403
    %1405 = vdwg.mxu0
    %v1406 = vld [vmem:[#allocation7] sm:$0xff]
    %v1407 = vld [vmem:[#allocation7 + $0x8] sm:$0xff]
    %v1408 = vld [vmem:[#allocation7 + $0x10] sm:$0xff]
    %v1409 = vld [vmem:[#allocation7 + $0x18] sm:$0xff]
    %v1410 = vld [vmem:[#allocation7 + $0x20] sm:$0xff]
    %v1411 = vld [vmem:[#allocation7 + $0x28] sm:$0xff]
    %v1412 = vld [vmem:[#allocation7 + $0x30] sm:$0xff]
    %v1413 = vld [vmem:[#allocation7 + $0x38] sm:$0xff]
    %v1414 = vld [vmem:[#allocation7 + $0x40] sm:$0xff]
    %v1415 = vld [vmem:[#allocation7 + $0x48] sm:$0xff]
    %v1416 = vld [vmem:[#allocation7 + $0x50] sm:$0xff]
    %v1417 = vld [vmem:[#allocation7 + $0x58] sm:$0xff]
    %v1418 = vld [vmem:[#allocation7 + $0x60] sm:$0xff]
    %v1419 = vld [vmem:[#allocation7 + $0x68] sm:$0xff]
    %v1420 = vld [vmem:[#allocation7 + $0x70] sm:$0xff]
    %v1421 = vld [vmem:[#allocation7 + $0x78] sm:$0xff]
    %v1422 = vld [vmem:[#allocation8] sm:$0x1]
    %v1424 = vperm.slane %v1422, 0
    %1426 = vmatpush.msra.mxu0 %v1421
    %1427 = vmatpush.msra.mxu0 %v1420
    %1428 = vmatpush.msra.mxu0 %v1419
    %1429 = vmatpush.msra.mxu0 %v1418
    %1430 = vmatpush.msra.mxu0 %v1417
    %1431 = vmatpush.msra.mxu0 %v1416
    %1432 = vmatpush.msra.mxu0 %v1415
    %1433 = vmatpush.msra.mxu0 %v1414
    %1434 = vmatpush.msra.mxu0 %v1413
    %1435 = vmatpush.msra.mxu0 %v1412
    %1436 = vmatpush.msra.mxu0 %v1411
    %1437 = vmatpush.msra.mxu0 %v1410
    %1438 = vmatpush.msra.mxu0 %v1409
    %1439 = vmatpush.msra.mxu0 %v1408
    %1440 = vmatpush.msra.mxu0 %v1407
    %1441 = vmatpush.msra.mxu0 %v1406
    %1442 = vmatmul.f32.gmra.mxu0 %v1404
    %v1443 = vpop.f32.mrf.mxu0
    %v1444 = vadd.f32 %v1424, %v1443
    %1445 = vdwg.mxu0
    %v1446 = vmax.f32 %v1444, 0.0
    %v1447 = vld [vmem:[#allocation10] sm:$0xff]
    %v1448 = vld [vmem:[#allocation10 + $0x8] sm:$0xff]
    %v1449 = vld [vmem:[#allocation10 + $0x10] sm:$0xff]
    %v1450 = vld [vmem:[#allocation10 + $0x18] sm:$0xff]
    %v1451 = vld [vmem:[#allocation10 + $0x20] sm:$0xff]
    %v1452 = vld [vmem:[#allocation10 + $0x28] sm:$0xff]
    %v1453 = vld [vmem:[#allocation10 + $0x30] sm:$0xff]
    %v1454 = vld [vmem:[#allocation10 + $0x38] sm:$0xff]
    %v1455 = vld [vmem:[#allocation10 + $0x40] sm:$0xff]
    %v1456 = vld [vmem:[#allocation10 + $0x48] sm:$0xff]
    %v1457 = vld [vmem:[#allocation10 + $0x50] sm:$0xff]
    %v1458 = vld [vmem:[#allocation10 + $0x58] sm:$0xff]
    %v1459 = vld [vmem:[#allocation10 + $0x60] sm:$0xff]
    %v1460 = vld [vmem:[#allocation10 + $0x68] sm:$0xff]
    %v1461 = vld [vmem:[#allocation10 + $0x70] sm:$0xff]
    %v1462 = vld [vmem:[#allocation10 + $0x78] sm:$0xff]
    %v1463 = vld [vmem:[#allocation2] sm:$0xff]
    %v1464 = vld [vmem:[#allocation2 + $0x8] sm:$0xff]
    %v1465 = vld [vmem:[#allocation2 + $0x10] sm:$0xff]
    %v1466 = vld [vmem:[#allocation11] sm:$0xff]
    %v1467 = vld [vmem:[#allocation11 + $0x8] sm:$0xff]
    %v1468 = vld [vmem:[#allocation11 + $0x10] sm:$0xff]
    %v1469 = vld [vmem:[#allocation11 + $0x18] sm:$0xff]
    %v1470 = vld [vmem:[#allocation11 + $0x20] sm:$0xff]
    %v1471 = vld [vmem:[#allocation11 + $0x28] sm:$0xff]
    %v1472 = vld [vmem:[#allocation11 + $0x30] sm:$0xff]
    %v1473 = vld [vmem:[#allocation11 + $0x38] sm:$0xff]
    %v1474 = vld [vmem:[#allocation11 + $0x40] sm:$0xff]
    %v1475 = vld [vmem:[#allocation11 + $0x48] sm:$0xff]
    %v1476 = vld [vmem:[#allocation11 + $0x50] sm:$0xff]
    %v1477 = vld [vmem:[#allocation11 + $0x58] sm:$0xff]
    %v1478 = vld [vmem:[#allocation11 + $0x60] sm:$0xff]
    %v1479 = vld [vmem:[#allocation11 + $0x68] sm:$0xff]
    %v1480 = vld [vmem:[#allocation11 + $0x70] sm:$0xff]
    %v1481 = vld [vmem:[#allocation11 + $0x78] sm:$0xff]
    %v1482 = vld [vmem:[#allocation11 + $0x80] sm:$0xff]
    %v1483 = vld [vmem:[#allocation11 + $0x88] sm:$0xff]
    %v1484 = vld [vmem:[#allocation11 + $0x90] sm:$0xff]
    %v1485 = vld [vmem:[#allocation11 + $0x98] sm:$0xff]
    %v1486 = vld [vmem:[#allocation11 + $0xa0] sm:$0xff]
    %v1487 = vld [vmem:[#allocation11 + $0xa8] sm:$0xff]
    %v1488 = vld [vmem:[#allocation11 + $0xb0] sm:$0xff]
    %v1489 = vld [vmem:[#allocation11 + $0xb8] sm:$0xff]
    %v1490 = vld [vmem:[#allocation11 + $0xc0] sm:$0xff]
    %v1491 = vld [vmem:[#allocation11 + $0xc8] sm:$0xff]
    %v1492 = vld [vmem:[#allocation11 + $0xd0] sm:$0xff]
    %v1493 = vld [vmem:[#allocation11 + $0xd8] sm:$0xff]
    %v1494 = vld [vmem:[#allocation11 + $0xe0] sm:$0xff]
    %v1495 = vld [vmem:[#allocation11 + $0xe8] sm:$0xff]
    %v1496 = vld [vmem:[#allocation11 + $0xf0] sm:$0xff]
    %v1497 = vld [vmem:[#allocation11 + $0xf8] sm:$0xff]
    %v1498 = vld [vmem:[#allocation11 + $0x100] sm:$0xff]
    %v1499 = vld [vmem:[#allocation11 + $0x108] sm:$0xff]
    %v1500 = vld [vmem:[#allocation11 + $0x110] sm:$0xff]
    %v1501 = vld [vmem:[#allocation11 + $0x118] sm:$0xff]
    %v1502 = vld [vmem:[#allocation11 + $0x120] sm:$0xff]
    %v1503 = vld [vmem:[#allocation11 + $0x128] sm:$0xf]
    %vm1504 = vcmask 359424
    %v1506 = vsel %vm1504, %v1465, 0
    %vm1508 = vcmask 1043456
    %v1510 = vsel %vm1508, %v1503, 0
    %1512 = vmatpush.msra.mxu0 %v1481
    %1513 = vmatpush.msra.mxu0 %v1480
    %1514 = vmatpush.msra.mxu0 %v1479
    %1515 = vmatpush.msra.mxu0 %v1478
    %1516 = vmatpush.msra.mxu0 %v1477
    %1517 = vmatpush.msra.mxu0 %v1476
    %1518 = vmatpush.msra.mxu0 %v1475
    %1519 = vmatpush.msra.mxu0 %v1474
    %1520 = vmatpush.msra.mxu0 %v1473
    %1521 = vmatpush.msra.mxu0 %v1472
    %1522 = vmatpush.msra.mxu0 %v1471
    %1523 = vmatpush.msra.mxu0 %v1470
    %1524 = vmatpush.msra.mxu0 %v1469
    %1525 = vmatpush.msra.mxu0 %v1468
    %1526 = vmatpush.msra.mxu0 %v1467
    %1527 = vmatpush.msra.mxu0 %v1466
    %1528 = vmatmul.f32.gmra.mxu0 %v1463
    %v1529 = vpop.f32.mrf.mxu0
    %v1530 = vadd.f32 0.0, %v1529
    %1531 = vdwg.mxu0
    %1532 = vmatpush.msra.mxu0 %v1497
    %1533 = vmatpush.msra.mxu0 %v1496
    %1534 = vmatpush.msra.mxu0 %v1495
    %1535 = vmatpush.msra.mxu0 %v1494
    %1536 = vmatpush.msra.mxu0 %v1493
    %1537 = vmatpush.msra.mxu0 %v1492
    %1538 = vmatpush.msra.mxu0 %v1491
    %1539 = vmatpush.msra.mxu0 %v1490
    %1540 = vmatpush.msra.mxu0 %v1489
    %1541 = vmatpush.msra.mxu0 %v1488
    %1542 = vmatpush.msra.mxu0 %v1487
    %1543 = vmatpush.msra.mxu0 %v1486
    %1544 = vmatpush.msra.mxu0 %v1485
    %1545 = vmatpush.msra.mxu0 %v1484
    %1546 = vmatpush.msra.mxu0 %v1483
    %1547 = vmatpush.msra.mxu0 %v1482
    %1548 = vmatmul.f32.gmra.mxu0 %v1464
    %v1549 = vpop.f32.mrf.mxu0
    %v1550 = vadd.f32 %v1530, %v1549
    %1551 = vdwg.mxu0
    %1552 = vmatpush.msra.mxu0 0.0
    %1553 = vmatpush.msra.mxu0 0.0
    %1554 = vmatpush.msra.mxu0 0.0
    %1555 = vmatpush.msra.mxu0 0.0
    %1556 = vmatpush.msra.mxu0 0.0
    %1557 = vmatpush.msra.mxu0 0.0
    %1558 = vmatpush.msra.mxu0 0.0
    %1559 = vmatpush.msra.mxu0 0.0
    %1560 = vmatpush.msra.mxu0 0.0
    %1561 = vmatpush.msra.mxu0 0.0
    %1562 = vmatpush.msra.mxu0 %v1510
    %1563 = vmatpush.msra.mxu0 %v1502
    %1564 = vmatpush.msra.mxu0 %v1501
    %1565 = vmatpush.msra.mxu0 %v1500
    %1566 = vmatpush.msra.mxu0 %v1499
    %1567 = vmatpush.msra.mxu0 %v1498
    %1568 = vmatmul.f32.gmra.mxu0 %v1506
    %v1569 = vpop.f32.mrf.mxu0
    %v1570 = vadd.f32 %v1550, %v1569
    %1571 = vdwg.mxu0
    %1572 = vmatpush.msra.mxu0 %v1462
    %1573 = vmatpush.msra.mxu0 %v1461
    %1574 = vmatpush.msra.mxu0 %v1460
    %1575 = vmatpush.msra.mxu0 %v1459
    %1576 = vmatpush.msra.mxu0 %v1458
    %1577 = vmatpush.msra.mxu0 %v1457
    %1578 = vmatpush.msra.mxu0 %v1456
    %1579 = vmatpush.msra.mxu0 %v1455
    %1580 = vmatpush.msra.mxu0 %v1454
    %1581 = vmatpush.msra.mxu0 %v1453
    %1582 = vmatpush.msra.mxu0 %v1452
    %1583 = vmatpush.msra.mxu0 %v1451
    %1584 = vmatpush.msra.mxu0 %v1450
    %1585 = vmatpush.msra.mxu0 %v1449
    %1586 = vmatpush.msra.mxu0 %v1448
    %1587 = vmatpush.msra.mxu0 %v1447
    %1588 = vmatmul.f32.gmra.mxu0 %v1446
    %v1589 = vpop.f32.mrf.mxu0
    %v1590 = vadd.f32 %v1570, %v1589
    %1591 = vdwg.mxu0
    %v1592 = vld [vmem:[#allocation13] sm:$0x1]
    %v1594 = vperm.slane %v1592, 0
    %v1596 = vadd.f32 %v1590, %v1594
    %v1597 = vmax.f32 %v1596, 0.0
    %v1598 = vld [vmem:[#allocation14] sm:$0xff]
    %v1599 = vld [vmem:[#allocation14 + $0x8] sm:$0xff]
    %v1600 = vld [vmem:[#allocation14 + $0x10] sm:$0xff]
    %v1601 = vld [vmem:[#allocation14 + $0x18] sm:$0xff]
    %v1602 = vld [vmem:[#allocation14 + $0x20] sm:$0xff]
    %v1603 = vld [vmem:[#allocation14 + $0x28] sm:$0xff]
    %v1604 = vld [vmem:[#allocation14 + $0x30] sm:$0xff]
    %v1605 = vld [vmem:[#allocation14 + $0x38] sm:$0xff]
    %v1606 = vld [vmem:[#allocation14 + $0x40] sm:$0xff]
    %v1607 = vld [vmem:[#allocation14 + $0x48] sm:$0xff]
    %v1608 = vld [vmem:[#allocation14 + $0x50] sm:$0xff]
    %v1609 = vld [vmem:[#allocation14 + $0x58] sm:$0xff]
    %v1610 = vld [vmem:[#allocation14 + $0x60] sm:$0xff]
    %v1611 = vld [vmem:[#allocation14 + $0x68] sm:$0xff]
    %v1612 = vld [vmem:[#allocation14 + $0x70] sm:$0xff]
    %v1613 = vld [vmem:[#allocation14 + $0x78] sm:$0xff]
    %v1614 = vld [vmem:[#allocation16] sm:$0x1]
    %v1616 = vperm.slane %v1614, 0
    %1618 = vmatpush.msra.mxu0 %v1613
    %1619 = vmatpush.msra.mxu0 %v1612
    %1620 = vmatpush.msra.mxu0 %v1611
    %1621 = vmatpush.msra.mxu0 %v1610
    %1622 = vmatpush.msra.mxu0 %v1609
    %1623 = vmatpush.msra.mxu0 %v1608
    %1624 = vmatpush.msra.mxu0 %v1607
    %1625 = vmatpush.msra.mxu0 %v1606
    %1626 = vmatpush.msra.mxu0 %v1605
    %1627 = vmatpush.msra.mxu0 %v1604
    %1628 = vmatpush.msra.mxu0 %v1603
    %1629 = vmatpush.msra.mxu0 %v1602
    %1630 = vmatpush.msra.mxu0 %v1601
    %1631 = vmatpush.msra.mxu0 %v1600
    %1632 = vmatpush.msra.mxu0 %v1599
    %1633 = vmatpush.msra.mxu0 %v1598
    %1634 = vmatmul.f32.gmra.mxu0 %v1597
    %v1635 = vpop.f32.mrf.mxu0
    %v1636 = vadd.f32 %v1616, %v1635
    %1637 = vdwg.mxu0
    %v1638 = vmax.f32 %v1636, 0.0
    %v1639 = vld [vmem:[#allocation17] sm:$0x1]
    %v1641 = vperm.slane %v1639, 0
    %v1643 = vmul.f32 %v1638, %v1641
    %1644 = vadd.xlane.f32.xlu0 %v1643
    %v1645 = vpop.xlane.xlu0 %1644
    %v1646 = vld [vmem:[#allocation19] sm:$0x1]
    %v1648 = vperm.slane %v1646, 0
    %v1650 = vadd.f32 %v1645, %v1648
    %1651 = vst [vmem:[#allocation20] sm:$0xff] %v1650
    // Predicated region
    $region94: #{tpu_custom_call.1} parent=1 // pred_check
      _
    $region95: #{tpu_custom_call.1} parent=1 // pred_check_branch
      %1653 = sbr.rel (0) target = $region97
    $region96: #{tpu_custom_call.1} parent=1 // pred_region
      %1655 = vsyncadd [#allocation4], 0
      %s1657 = sshll.u32 [#allocation20], 4
      %s1658 = int_to_ptr.vmem [resolvable:$true] %s1657
      %s1659 = sshll.u32 %s12, 4
      %s1660 = int_to_ptr.hbm [resolvable:$true] %s1659
      %1662 = dma.vmem_to_hbm [thread:$0]  %s1658, 128, %s1660, [#allocation4]
    $region97: #{tpu_custom_call.1} parent=1 // pred_fallthru
      _
    // Predicated region
    $region98: #{tpu_custom_call.1} parent=1 // pred_check
      _
    $region99: #{tpu_custom_call.1} parent=1 // pred_check_branch
      %1664 = sbr.rel (0) target = $region101
    $region100: #{tpu_custom_call.1} parent=1 // pred_region
      %1666 = dma.done [#allocation4], 128
    $region101: #{tpu_custom_call.1} parent=1 // pred_fallthru
      _
    %1667 = vsyncpa [#allocation3], 1
    %1668 = vsyncpa [#allocation6], 1
    %1669 = vsyncpa [#allocation9], 1
    %1670 = vsyncpa [#allocation12], 1
    %1671 = vsyncpa [#allocation15], 1
    %1672 = vsyncpa [#allocation18], 1
    %1673 = vsyncpa [#allocation4], 1

</llo_original>
